<compile_context>
chip_gen: v5e
topology: v5e:2x2
jax: 0.10.0
libtpu: 0.0.40
codegen_flags: <defaults>
</compile_context>

<pallas_src>
import functools
import math

import jax
import jax.numpy as jnp
from jax import lax
from jax.experimental import pallas as pl
from jax.experimental.pallas import tpu as pltpu


def _bert_self_attention_kernel(xq_ref, xkv_ref, bias_ref, wq_ref, bq_ref,
                                wkv_ref, bkv_ref, out_ref, kv_ref, acc_ref,
                                *, num_heads):
    # xq_ref:  (q_blk, hidden)      query-tile rows of x
    # xkv_ref: (seq,   hidden)      full sequence rows of x (for K/V projection)
    # bias_ref:(1, seq)             additive key mask (-inf / 0), f32
    # wq_ref:  (hidden, hidden)     Wq pre-scaled by 1/sqrt(head_dim)
    # bq_ref:  (1, hidden)          bq pre-scaled, f32
    # wkv_ref: (hidden, 2*hidden)   [Wk | Wv]
    # bkv_ref: (1, 2*hidden)        [bk | bv], f32
    # out_ref: (q_blk, hidden)
    # kv_ref:  VMEM (seq, 2*hidden) K/V scratch, persists across the query-tile axis
    # acc_ref: VMEM (q_blk, hidden) f32 output accumulator
    q_blk, hidden = xq_ref.shape
    seq_kv = xkv_ref.shape[0]
    head_dim = hidden // num_heads
    mxu_dtype = kv_ref.dtype

    qi = pl.program_id(1)

    # K/V projection once per batch row (query-tile axis is the inner, serial axis).
    @pl.when(qi == 0)
    def _():
        kv = jnp.dot(xkv_ref[...], wkv_ref[...],
                     preferred_element_type=jnp.float32) + bkv_ref[...]
        kv_ref[...] = kv.astype(mxu_dtype)

    # Q projection for this query tile (1/sqrt(dk) already folded into wq/bq).
    q = (jnp.dot(xq_ref[...], wq_ref[...], preferred_element_type=jnp.float32)
         + bq_ref[...]).astype(mxu_dtype)

    kv = kv_ref[...]

    # Hoist the mask-bias broadcast out of the head loop (no CSE of broadcast_in_dim).
    bias = jnp.broadcast_to(bias_ref[...], (q_blk, seq_kv)).astype(jnp.float32)

    # Process heads in pairs -> 2*head_dim-wide accumulator stores
    # (lane-dense 128-wide at production head_dim=64).
    pair = 2 if num_heads % 2 == 0 else 1
    for h0 in range(0, num_heads, pair):
        outs = []
        for h in range(h0, h0 + pair):
            lo, hi = h * head_dim, (h + 1) * head_dim
            qh = q[:, lo:hi]                       # (q_blk, d)
            kh = kv[:, lo:hi]                      # (seq, d)
            vh = kv[:, hidden + lo:hidden + hi]    # (seq, d)

            # q @ k^T without materializing a transpose of K.
            s = lax.dot_general(qh, kh, (((1,), (1,)), ((), ())),
                                preferred_element_type=jnp.float32)   # (q_blk, seq)
            s = s + bias

            # Explicit softmax; row normalization uses the EUP reciprocal.
            m = jnp.max(s, axis=-1, keepdims=True)
            e = jnp.exp(s - m)
            denom = jnp.sum(e, axis=-1, keepdims=True)
            p = e * pl.reciprocal(denom, approx=True)
            # TODO(synk): attention-probs dropout omitted (eval-mode identity).

            outs.append(jnp.dot(p.astype(mxu_dtype), vh,
                                preferred_element_type=jnp.float32))
        blk = outs[0] if pair == 1 else jnp.concatenate(outs, axis=-1)
        acc_ref[:, h0 * head_dim:(h0 + pair) * head_dim] = blk

    # Single full-tile store per (batch row, query tile).
    out_ref[...] = acc_ref[...].astype(out_ref.dtype)


def bert_self_attention(x, mask, wq, bq, wk, bk, wv, bv, *, num_heads,
                        q_block=None, mxu_dtype=None):
    bs, seq, hidden = x.shape
    assert hidden % num_heads == 0
    head_dim = hidden // num_heads

    if mxu_dtype is None:
        mxu_dtype = x.dtype          # keep f32 here; use jnp.bfloat16 in production
    if q_block is None:
        q_block = 256                # v6e/v7x default; 128 is fine on v5e
    q_block = min(q_block, seq)
    assert seq % q_block == 0
    n_qt = seq // q_block

    # Fold 1/sqrt(head_dim) into the query projection (identical math: the -inf mask
    # entries are scale-invariant, finite entries see the pre-scaled-Q formulation).
    inv_sqrt_dk = 1.0 / math.sqrt(head_dim)
    w_q = (wq * inv_sqrt_dk).astype(mxu_dtype)
    b_q = (bq * inv_sqrt_dk).astype(jnp.float32).reshape(1, hidden)
    w_kv = jnp.concatenate([wk, wv], axis=1).astype(mxu_dtype)
    b_kv = jnp.concatenate([bk, bv], axis=0).astype(jnp.float32).reshape(1, 2 * hidden)

    x_in = x.astype(mxu_dtype)
    # Additive key mask computed once in the wrapper (1 = attend, 0 = masked).
    mask2 = mask.reshape(bs, seq)
    bias = jnp.where(mask2 == 0, -jnp.inf, 0.0).astype(jnp.float32).reshape(bs, 1, seq)

    it_m = jnp.dtype(mxu_dtype).itemsize
    it_o = jnp.dtype(x.dtype).itemsize

    # Advisory cost estimate for the XLA scheduler.
    flops = int(2 * bs * seq * hidden * hidden            # Q projection
                + 2 * bs * seq * hidden * 2 * hidden      # K/V projection
                + 4 * bs * seq * seq * hidden)            # QK^T + P@V
    transcendentals = int(bs * num_heads * seq * seq)
    bytes_accessed = int(2 * x_in.size * it_m + bias.size * 4
                         + (w_q.size + w_kv.size) * it_m + (b_q.size + b_kv.size) * 4
                         + bs * seq * hidden * it_o)

    # Explicit VMEM budget (blocks + scratch, worst-case double-buffered) + headroom.
    blk_bytes = (2 * q_block * hidden * it_m               # x query tile
                 + 2 * seq * hidden * it_m                 # x K/V row
                 + 2 * seq * 4                             # mask bias
                 + 2 * (hidden * hidden + hidden * 2 * hidden) * it_m   # weights
                 + 2 * 3 * hidden * 4                      # biases
                 + 2 * q_block * hidden * it_o             # out
                 + seq * 2 * hidden * it_m                 # K/V scratch
                 + q_block * hidden * 4)                   # acc scratch
    vmem_limit = int(min(max(2 * blk_bytes + (4 << 20), 8 << 20), 64 << 20))

    kernel = functools.partial(_bert_self_attention_kernel, num_heads=num_heads)
    grid = (bs, n_qt)

    def _call(single_buffer_weights):
        wmode = ({"pipeline_mode": pl.Buffered(buffer_count=1)}
                 if single_buffer_weights else {})
        in_specs = [
            pl.BlockSpec((pl.Squeezed(), q_block, hidden), lambda b, qi: (b, qi, 0)),  # x (Q tile)
            pl.BlockSpec((pl.Squeezed(), seq, hidden), lambda b, qi: (b, 0, 0)),       # x (K/V row)
            pl.BlockSpec((pl.Squeezed(), 1, seq), lambda b, qi: (b, 0, 0)),            # mask bias
            pl.BlockSpec((hidden, hidden), lambda b, qi: (0, 0), **wmode),             # Wq (scaled)
            pl.BlockSpec((1, hidden), lambda b, qi: (0, 0), **wmode),                  # bq (scaled)
            pl.BlockSpec((hidden, 2 * hidden), lambda b, qi: (0, 0), **wmode),         # [Wk|Wv]
            pl.BlockSpec((1, 2 * hidden), lambda b, qi: (0, 0), **wmode),              # [bk|bv]
        ]
        out_specs = pl.BlockSpec((pl.Squeezed(), q_block, hidden), lambda b, qi: (b, qi, 0))
        return pl.pallas_call(
            kernel,
            out_shape=jax.ShapeDtypeStruct((bs, seq, hidden), x.dtype),
            grid_spec=pltpu.PrefetchScalarGridSpec(
                num_scalar_prefetch=0,
                grid=grid,
                in_specs=in_specs,
                out_specs=out_specs,
                scratch_shapes=[pltpu.VMEM((seq, 2 * hidden), mxu_dtype),   # K/V carry
                                pltpu.VMEM((q_block, hidden), jnp.float32)],  # acc
            ),
            compiler_params=pltpu.CompilerParams(
                dimension_semantics=("parallel", "arbitrary"),
                vmem_limit_bytes=vmem_limit,
            ),
            cost_estimate=pl.CostEstimate(flops=flops,
                                          transcendentals=transcendentals,
                                          bytes_accessed=bytes_accessed),
        )(x_in, x_in, bias, w_q, b_q, w_kv, b_kv)

    try:
        return _call(True)
    except Exception:
        # pipeline_mode=pl.Buffered(1) not supported by this JAX build:
        # fall back to default double-buffering of the constant weight blocks.
        return _call(False)


def _reference(x, mask, wq, bq, wk, bk, wv, bv, num_heads):
    bs, seq, hidden = x.shape
    d = hidden // num_heads

    def split_heads(t):  # [bs, seq, hidden] -> [bs, H, seq, d]
        return t.reshape(bs, seq, num_heads, d).transpose(0, 2, 1, 3)

    q = split_heads(x @ wq + bq)
    k = split_heads(x @ wk + bk)
    v = split_heads(x @ wv + bv)
    s = jnp.einsum("bhqd,bhkd->bhqk", q, k)
    m = mask[:, None, None, :]
    s = jnp.where(m == 0, -jnp.inf, s)
    p = jax.nn.softmax(s / (d ** 0.5), axis=-1)
    o = jnp.einsum("bhqk,bhkd->bhqd", p, v)
    return o.transpose(0, 2, 1, 3).reshape(bs, seq, hidden)


if __name__ == "__main__":
    bs, seq, hidden, num_heads = 2, 8, 32, 4

    key = jax.random.PRNGKey(0)
    kx, kq, kk, kv, kbq, kbk, kbv = jax.random.split(key, 7)

    x = jax.random.normal(kx, (bs, seq, hidden), dtype=jnp.float32)
    wq = jax.random.normal(kq, (hidden, hidden), dtype=jnp.float32) * 0.05
    wk = jax.random.normal(kk, (hidden, hidden), dtype=jnp.float32) * 0.05
    wv = jax.random.normal(kv, (hidden, hidden), dtype=jnp.float32) * 0.05
    bq = jax.random.normal(kbq, (hidden,), dtype=jnp.float32) * 0.05
    bk = jax.random.normal(kbk, (hidden,), dtype=jnp.float32) * 0.05
    bv = jax.random.normal(kbv, (hidden,), dtype=jnp.float32) * 0.05

    # mask: 1 = attend, 0 = masked (padding). Batch 0 fully visible, batch 1 padded.
    mask = jnp.ones((bs, seq), dtype=jnp.float32)
    mask = mask.at[1, seq - 3:].set(0.0)

    out = bert_self_attention(x, mask, wq, bq, wk, bk, wv, bv, num_heads=num_heads)
    out = jax.block_until_ready(out)

    ref = _reference(x, mask, wq, bq, wk, bk, wv, bv, num_heads)
    assert out.shape == (bs, seq, hidden)
    # Tolerance accounts for the approximate (EUP) reciprocal in the softmax norm.
    assert jnp.allclose(out, ref, atol=2e-3, rtol=2e-3), "mismatch vs reference"

    print("KERNEL_OK")
</pallas_src>

<mosaic_0001>
module attributes {stable_mosaic.version = 11 : i64} {
  func.func @_bert_self_attention_kernel(%arg0: i32, %arg1: i32, %arg2: memref<1x8x32xf32, #tpu.memory_space<vmem>>, %arg3: memref<1x8x32xf32, #tpu.memory_space<vmem>>, %arg4: memref<1x1x8xf32, #tpu.memory_space<vmem>>, %arg5: memref<32x32xf32, #tpu.memory_space<vmem>>, %arg6: memref<1x32xf32, #tpu.memory_space<vmem>>, %arg7: memref<32x64xf32, #tpu.memory_space<vmem>>, %arg8: memref<1x64xf32, #tpu.memory_space<vmem>>, %arg9: memref<1x8x32xf32, #tpu.memory_space<vmem>>, %arg10: memref<8x64xf32, #tpu.memory_space<vmem>>, %arg11: memref<8x32xf32, #tpu.memory_space<vmem>>) attributes {dimension_semantics = [#tpu.dimension_semantics<parallel>, #tpu.dimension_semantics<arbitrary>], iteration_bounds = array<i64: 2, 1>, scalar_prefetch = 0 : i64, scratch_operands = 2 : i64, tpu.core_type = #tpu.core_type<tc>, window_params = [{transform_indices = @transform_0, window_bounds = array<i64: 1, 8, 32>}, {transform_indices = @transform_1, window_bounds = array<i64: 1, 8, 32>}, {transform_indices = @transform_2, window_bounds = array<i64: 1, 1, 8>}, {pipeline_mode = #tpu.pipeline_mode<synchronous>, transform_indices = @transform_3, window_bounds = array<i64: 32, 32>}, {pipeline_mode = #tpu.pipeline_mode<synchronous>, transform_indices = @transform_4, window_bounds = array<i64: 1, 32>}, {pipeline_mode = #tpu.pipeline_mode<synchronous>, transform_indices = @transform_5, window_bounds = array<i64: 32, 64>}, {pipeline_mode = #tpu.pipeline_mode<synchronous>, transform_indices = @transform_6, window_bounds = array<i64: 1, 64>}, {transform_indices = @transform_7, window_bounds = array<i64: 1, 8, 32>}]} {
    %c0_i32 = arith.constant 0 : i32
    %0 = arith.cmpi eq, %arg1, %c0_i32 : i32
    %1 = arith.extui %0 : i1 to i32
    %c0_i32_0 = arith.constant 0 : i32
    %2 = arith.cmpi ne, %1, %c0_i32_0 : i32
    scf.if %2 {
      %c0_36 = arith.constant 0 : index
      %c0_37 = arith.constant 0 : index
      %c0_38 = arith.constant 0 : index
      %87 = vector.load %arg3[%c0_36, %c0_37, %c0_38] : memref<1x8x32xf32, #tpu.memory_space<vmem>>, vector<1x8x32xf32>
      %88 = vector.shape_cast %87 : vector<1x8x32xf32> to vector<8x32xf32>
      %c0_39 = arith.constant 0 : index
      %c0_40 = arith.constant 0 : index
      %89 = vector.load %arg7[%c0_39, %c0_40] : memref<32x64xf32, #tpu.memory_space<vmem>>, vector<32x64xf32>
      %cst_41 = arith.constant dense<0.000000e+00> : vector<8x64xf32>
      %90 = tpu.matmul %88, %89, %cst_41 {dimension_numbers = #tpu.dot_dimension_numbers<[1], [0], [0], [1], [0, 0, 1, 1], [], []>} : vector<8x32xf32>, vector<32x64xf32>, vector<8x64xf32> -> vector<8x64xf32>
      %c0_42 = arith.constant 0 : index
      %c0_43 = arith.constant 0 : index
      %91 = vector.load %arg8[%c0_42, %c0_43] : memref<1x64xf32, #tpu.memory_space<vmem>>, vector<1x64xf32>
      %92 = vector.broadcast %91 : vector<1x64xf32> to vector<8x64xf32>
      %93 = arith.addf %90, %92 : vector<8x64xf32>
      %c0_44 = arith.constant 0 : index
      %c0_45 = arith.constant 0 : index
      %94 = vector.load %arg10[%c0_44, %c0_45] : memref<8x64xf32, #tpu.memory_space<vmem>>, vector<8x64xf32>
      tpu.vector_store %arg10[%c0_44, %c0_45], %93 {strides = array<i32>} : memref<8x64xf32, #tpu.memory_space<vmem>>, vector<8x64xf32>,
    } else {
    }
    %c0 = arith.constant 0 : index
    %c0_1 = arith.constant 0 : index
    %c0_2 = arith.constant 0 : index
    %3 = vector.load %arg2[%c0, %c0_1, %c0_2] : memref<1x8x32xf32, #tpu.memory_space<vmem>>, vector<1x8x32xf32>
    %4 = vector.shape_cast %3 : vector<1x8x32xf32> to vector<8x32xf32>
    %c0_3 = arith.constant 0 : index
    %c0_4 = arith.constant 0 : index
    %5 = vector.load %arg5[%c0_3, %c0_4] : memref<32x32xf32, #tpu.memory_space<vmem>>, vector<32x32xf32>
    %cst = arith.constant dense<0.000000e+00> : vector<8x32xf32>
    %6 = tpu.matmul %4, %5, %cst {dimension_numbers = #tpu.dot_dimension_numbers<[1], [0], [0], [1], [0, 0, 1, 1], [], []>} : vector<8x32xf32>, vector<32x32xf32>, vector<8x32xf32> -> vector<8x32xf32>
    %c0_5 = arith.constant 0 : index
    %c0_6 = arith.constant 0 : index
    %7 = vector.load %arg6[%c0_5, %c0_6] : memref<1x32xf32, #tpu.memory_space<vmem>>, vector<1x32xf32>
    %8 = vector.broadcast %7 : vector<1x32xf32> to vector<8x32xf32>
    %9 = arith.addf %6, %8 : vector<8x32xf32>
    %c0_7 = arith.constant 0 : index
    %c0_8 = arith.constant 0 : index
    %10 = vector.load %arg10[%c0_7, %c0_8] : memref<8x64xf32, #tpu.memory_space<vmem>>, vector<8x64xf32>
    %c0_9 = arith.constant 0 : index
    %c0_10 = arith.constant 0 : index
    %c0_11 = arith.constant 0 : index
    %11 = vector.load %arg4[%c0_9, %c0_10, %c0_11] : memref<1x1x8xf32, #tpu.memory_space<vmem>>, vector<1x1x8xf32>
    %12 = vector.shape_cast %11 : vector<1x1x8xf32> to vector<1x8xf32>
    %13 = vector.shape_cast %12 : vector<1x8xf32> to vector<1x8xf32>
    %14 = vector.broadcast %13 : vector<1x8xf32> to vector<8x8xf32>
    %15 = vector.extract_strided_slice %9 {offsets = [0, 0], sizes = [8, 8], strides = [1, 1]} : vector<8x32xf32> to vector<8x8xf32>
    %16 = vector.extract_strided_slice %10 {offsets = [0, 0], sizes = [8, 8], strides = [1, 1]} : vector<8x64xf32> to vector<8x8xf32>
    %17 = vector.extract_strided_slice %10 {offsets = [0, 32], sizes = [8, 8], strides = [1, 1]} : vector<8x64xf32> to vector<8x8xf32>
    %cst_12 = arith.constant dense<0.000000e+00> : vector<8x8xf32>
    %18 = tpu.matmul %15, %16, %cst_12 {dimension_numbers = #tpu.dot_dimension_numbers<[1], [1], [0], [0], [0, 0, 1, 0], [], []>} : vector<8x8xf32>, vector<8x8xf32>, vector<8x8xf32> -> vector<8x8xf32>
    %19 = arith.addf %18, %14 : vector<8x8xf32>
    %cst_13 = arith.constant dense<0xFF800000> : vector<8xf32>
    %20 = vector.multi_reduction <maximumf>, %19, %cst_13 [1] : vector<8x8xf32> to vector<8xf32>
    %21 = vector.shape_cast %20 : vector<8xf32> to vector<8x1xf32>
    %22 = vector.broadcast %21 : vector<8x1xf32> to vector<8x8xf32>
    %23 = arith.subf %19, %22 : vector<8x8xf32>
    %24 = math.exp %23 : vector<8x8xf32>
    %cst_14 = arith.constant dense<0.000000e+00> : vector<8xf32>
    %25 = vector.multi_reduction <add>, %24, %cst_14 [1] : vector<8x8xf32> to vector<8xf32>
    %26 = vector.shape_cast %25 : vector<8xf32> to vector<8x1xf32>
    %27 = tpu.reciprocal %26 {approx = true} : vector<8x1xf32> -> vector<8x1xf32>
    %28 = vector.broadcast %27 : vector<8x1xf32> to vector<8x8xf32>
    %29 = arith.mulf %24, %28 : vector<8x8xf32>
    %cst_15 = arith.constant dense<0.000000e+00> : vector<8x8xf32>
    %30 = tpu.matmul %29, %17, %cst_15 {dimension_numbers = #tpu.dot_dimension_numbers<[1], [0], [0], [1], [0, 0, 1, 1], [], []>} : vector<8x8xf32>, vector<8x8xf32>, vector<8x8xf32> -> vector<8x8xf32>
    %31 = vector.extract_strided_slice %9 {offsets = [0, 8], sizes = [8, 8], strides = [1, 1]} : vector<8x32xf32> to vector<8x8xf32>
    %32 = vector.extract_strided_slice %10 {offsets = [0, 8], sizes = [8, 8], strides = [1, 1]} : vector<8x64xf32> to vector<8x8xf32>
    %33 = vector.extract_strided_slice %10 {offsets = [0, 40], sizes = [8, 8], strides = [1, 1]} : vector<8x64xf32> to vector<8x8xf32>
    %cst_16 = arith.constant dense<0.000000e+00> : vector<8x8xf32>
    %34 = tpu.matmul %31, %32, %cst_16 {dimension_numbers = #tpu.dot_dimension_numbers<[1], [1], [0], [0], [0, 0, 1, 0], [], []>} : vector<8x8xf32>, vector<8x8xf32>, vector<8x8xf32> -> vector<8x8xf32>
    %35 = arith.addf %34, %14 : vector<8x8xf32>
    %cst_17 = arith.constant dense<0xFF800000> : vector<8xf32>
    %36 = vector.multi_reduction <maximumf>, %35, %cst_17 [1] : vector<8x8xf32> to vector<8xf32>
    %37 = vector.shape_cast %36 : vector<8xf32> to vector<8x1xf32>
    %38 = vector.broadcast %37 : vector<8x1xf32> to vector<8x8xf32>
    %39 = arith.subf %35, %38 : vector<8x8xf32>
    %40 = math.exp %39 : vector<8x8xf32>
    %cst_18 = arith.constant dense<0.000000e+00> : vector<8xf32>
    %41 = vector.multi_reduction <add>, %40, %cst_18 [1] : vector<8x8xf32> to vector<8xf32>
    %42 = vector.shape_cast %41 : vector<8xf32> to vector<8x1xf32>
    %43 = tpu.reciprocal %42 {approx = true} : vector<8x1xf32> -> vector<8x1xf32>
    %44 = vector.broadcast %43 : vector<8x1xf32> to vector<8x8xf32>
    %45 = arith.mulf %40, %44 : vector<8x8xf32>
    %cst_19 = arith.constant dense<0.000000e+00> : vector<8x8xf32>
    %46 = tpu.matmul %45, %33, %cst_19 {dimension_numbers = #tpu.dot_dimension_numbers<[1], [0], [0], [1], [0, 0, 1, 1], [], []>} : vector<8x8xf32>, vector<8x8xf32>, vector<8x8xf32> -> vector<8x8xf32>
    %47 = tpu.concatenate %30, %46 in 1 : vector<8x8xf32>, vector<8x8xf32> -> vector<8x16xf32>
    %c0_20 = arith.constant 0 : index
    %c0_21 = arith.constant 0 : index
    %48 = vector.load %arg11[%c0_20, %c0_21] : memref<8x32xf32, #tpu.memory_space<vmem>>, vector<8x16xf32>
    tpu.vector_store %arg11[%c0_20, %c0_21], %47 {strides = array<i32>} : memref<8x32xf32, #tpu.memory_space<vmem>>, vector<8x16xf32>,
    %49 = vector.extract_strided_slice %9 {offsets = [0, 16], sizes = [8, 8], strides = [1, 1]} : vector<8x32xf32> to vector<8x8xf32>
    %50 = vector.extract_strided_slice %10 {offsets = [0, 16], sizes = [8, 8], strides = [1, 1]} : vector<8x64xf32> to vector<8x8xf32>
    %51 = vector.extract_strided_slice %10 {offsets = [0, 48], sizes = [8, 8], strides = [1, 1]} : vector<8x64xf32> to vector<8x8xf32>
    %cst_22 = arith.constant dense<0.000000e+00> : vector<8x8xf32>
    %52 = tpu.matmul %49, %50, %cst_22 {dimension_numbers = #tpu.dot_dimension_numbers<[1], [1], [0], [0], [0, 0, 1, 0], [], []>} : vector<8x8xf32>, vector<8x8xf32>, vector<8x8xf32> -> vector<8x8xf32>
    %53 = arith.addf %52, %14 : vector<8x8xf32>
    %cst_23 = arith.constant dense<0xFF800000> : vector<8xf32>
    %54 = vector.multi_reduction <maximumf>, %53, %cst_23 [1] : vector<8x8xf32> to vector<8xf32>
    %55 = vector.shape_cast %54 : vector<8xf32> to vector<8x1xf32>
    %56 = vector.broadcast %55 : vector<8x1xf32> to vector<8x8xf32>
    %57 = arith.subf %53, %56 : vector<8x8xf32>
    %58 = math.exp %57 : vector<8x8xf32>
    %cst_24 = arith.constant dense<0.000000e+00> : vector<8xf32>
    %59 = vector.multi_reduction <add>, %58, %cst_24 [1] : vector<8x8xf32> to vector<8xf32>
    %60 = vector.shape_cast %59 : vector<8xf32> to vector<8x1xf32>
    %61 = tpu.reciprocal %60 {approx = true} : vector<8x1xf32> -> vector<8x1xf32>
    %62 = vector.broadcast %61 : vector<8x1xf32> to vector<8x8xf32>
    %63 = arith.mulf %58, %62 : vector<8x8xf32>
    %cst_25 = arith.constant dense<0.000000e+00> : vector<8x8xf32>
    %64 = tpu.matmul %63, %51, %cst_25 {dimension_numbers = #tpu.dot_dimension_numbers<[1], [0], [0], [1], [0, 0, 1, 1], [], []>} : vector<8x8xf32>, vector<8x8xf32>, vector<8x8xf32> -> vector<8x8xf32>
    %65 = vector.extract_strided_slice %9 {offsets = [0, 24], sizes = [8, 8], strides = [1, 1]} : vector<8x32xf32> to vector<8x8xf32>
    %66 = vector.extract_strided_slice %10 {offsets = [0, 24], sizes = [8, 8], strides = [1, 1]} : vector<8x64xf32> to vector<8x8xf32>
    %67 = vector.extract_strided_slice %10 {offsets = [0, 56], sizes = [8, 8], strides = [1, 1]} : vector<8x64xf32> to vector<8x8xf32>
    %cst_26 = arith.constant dense<0.000000e+00> : vector<8x8xf32>
    %68 = tpu.matmul %65, %66, %cst_26 {dimension_numbers = #tpu.dot_dimension_numbers<[1], [1], [0], [0], [0, 0, 1, 0], [], []>} : vector<8x8xf32>, vector<8x8xf32>, vector<8x8xf32> -> vector<8x8xf32>
    %69 = arith.addf %68, %14 : vector<8x8xf32>
    %cst_27 = arith.constant dense<0xFF800000> : vector<8xf32>
    %70 = vector.multi_reduction <maximumf>, %69, %cst_27 [1] : vector<8x8xf32> to vector<8xf32>
    %71 = vector.shape_cast %70 : vector<8xf32> to vector<8x1xf32>
    %72 = vector.broadcast %71 : vector<8x1xf32> to vector<8x8xf32>
    %73 = arith.subf %69, %72 : vector<8x8xf32>
    %74 = math.exp %73 : vector<8x8xf32>
    %cst_28 = arith.constant dense<0.000000e+00> : vector<8xf32>
    %75 = vector.multi_reduction <add>, %74, %cst_28 [1] : vector<8x8xf32> to vector<8xf32>
    %76 = vector.shape_cast %75 : vector<8xf32> to vector<8x1xf32>
    %77 = tpu.reciprocal %76 {approx = true} : vector<8x1xf32> -> vector<8x1xf32>
    %78 = vector.broadcast %77 : vector<8x1xf32> to vector<8x8xf32>
    %79 = arith.mulf %74, %78 : vector<8x8xf32>
    %cst_29 = arith.constant dense<0.000000e+00> : vector<8x8xf32>
    %80 = tpu.matmul %79, %67, %cst_29 {dimension_numbers = #tpu.dot_dimension_numbers<[1], [0], [0], [1], [0, 0, 1, 1], [], []>} : vector<8x8xf32>, vector<8x8xf32>, vector<8x8xf32> -> vector<8x8xf32>
    %81 = tpu.concatenate %64, %80 in 1 : vector<8x8xf32>, vector<8x8xf32> -> vector<8x16xf32>
    %c0_30 = arith.constant 0 : index
    %c16 = arith.constant 16 : index
    %82 = vector.load %arg11[%c0_30, %c16] : memref<8x32xf32, #tpu.memory_space<vmem>>, vector<8x16xf32>
    tpu.vector_store %arg11[%c0_30, %c16], %81 {strides = array<i32>} : memref<8x32xf32, #tpu.memory_space<vmem>>, vector<8x16xf32>,
    %c0_31 = arith.constant 0 : index
    %c0_32 = arith.constant 0 : index
    %83 = vector.load %arg11[%c0_31, %c0_32] : memref<8x32xf32, #tpu.memory_space<vmem>>, vector<8x32xf32>
    %c0_33 = arith.constant 0 : index
    %c0_34 = arith.constant 0 : index
    %c0_35 = arith.constant 0 : index
    %84 = vector.load %arg9[%c0_33, %c0_34, %c0_35] : memref<1x8x32xf32, #tpu.memory_space<vmem>>, vector<1x8x32xf32>
    %85 = vector.shape_cast %84 : vector<1x8x32xf32> to vector<8x32xf32>
    %86 = vector.shape_cast %83 : vector<8x32xf32> to vector<1x8x32xf32>
    tpu.vector_store %arg9[%c0_33, %c0_34, %c0_35], %86 {strides = array<i32>} : memref<1x8x32xf32, #tpu.memory_space<vmem>>, vector<1x8x32xf32>,
    return
  }
  func.func @transform_0(%arg0: i32, %arg1: i32) -> (i32, i32, i32) {
    %c0_i32 = arith.constant 0 : i32
    %c0_i32_0 = arith.constant 0 : i32
    return %arg0, %arg1, %c0_i32 : i32, i32, i32
  }
  func.func @transform_1(%arg0: i32, %arg1: i32) -> (i32, i32, i32) {
    %c0_i32 = arith.constant 0 : i32
    %c0_i32_0 = arith.constant 0 : i32
    %c0_i32_1 = arith.constant 0 : i32
    return %arg0, %c0_i32, %c0_i32_0 : i32, i32, i32
  }
  func.func @transform_2(%arg0: i32, %arg1: i32) -> (i32, i32, i32) {
    %c0_i32 = arith.constant 0 : i32
    %c0_i32_0 = arith.constant 0 : i32
    %c0_i32_1 = arith.constant 0 : i32
    return %arg0, %c0_i32, %c0_i32_0 : i32, i32, i32
  }
  func.func @transform_3(%arg0: i32, %arg1: i32) -> (i32, i32) {
    %c0_i32 = arith.constant 0 : i32
    %c0_i32_0 = arith.constant 0 : i32
    %c0_i32_1 = arith.constant 0 : i32
    return %c0_i32, %c0_i32_0 : i32, i32
  }
  func.func @transform_4(%arg0: i32, %arg1: i32) -> (i32, i32) {
    %c0_i32 = arith.constant 0 : i32
    %c0_i32_0 = arith.constant 0 : i32
    %c0_i32_1 = arith.constant 0 : i32
    return %c0_i32, %c0_i32_0 : i32, i32
  }
  func.func @transform_5(%arg0: i32, %arg1: i32) -> (i32, i32) {
    %c0_i32 = arith.constant 0 : i32
    %c0_i32_0 = arith.constant 0 : i32
    %c0_i32_1 = arith.constant 0 : i32
    return %c0_i32, %c0_i32_0 : i32, i32
  }
  func.func @transform_6(%arg0: i32, %arg1: i32) -> (i32, i32) {
    %c0_i32 = arith.constant 0 : i32
    %c0_i32_0 = arith.constant 0 : i32
    %c0_i32_1 = arith.constant 0 : i32
    return %c0_i32, %c0_i32_0 : i32, i32
  }
  func.func @transform_7(%arg0: i32, %arg1: i32) -> (i32, i32, i32) {
    %c0_i32 = arith.constant 0 : i32
    %c0_i32_0 = arith.constant 0 : i32
    return %arg0, %arg1, %c0_i32 : i32, i32, i32
  }
}

module attributes {stable_mosaic.version = 11 : i64} {
  func.func @_bert_self_attention_kernel(%arg0: i32, %arg1: i32, %arg2: memref<1x8x32xf32, #tpu.memory_space<vmem>>, %arg3: memref<1x8x32xf32, #tpu.memory_space<vmem>>, %arg4: memref<1x1x8xf32, #tpu.memory_space<vmem>>, %arg5: memref<32x32xf32, #tpu.memory_space<vmem>>, %arg6: memref<1x32xf32, #tpu.memory_space<vmem>>, %arg7: memref<32x64xf32, #tpu.memory_space<vmem>>, %arg8: memref<1x64xf32, #tpu.memory_space<vmem>>, %arg9: memref<1x8x32xf32, #tpu.memory_space<vmem>>, %arg10: memref<8x64xf32, #tpu.memory_space<vmem>>, %arg11: memref<8x32xf32, #tpu.memory_space<vmem>>) attributes {dimension_semantics = [#tpu.dimension_semantics<parallel>, #tpu.dimension_semantics<arbitrary>], iteration_bounds = array<i64: 2, 1>, scalar_prefetch = 0 : i64, scratch_operands = 2 : i64, tpu.core_type = #tpu.core_type<tc>, window_params = [{transform_indices = @transform_0, window_bounds = array<i64: 1, 8, 32>}, {transform_indices = @transform_1, window_bounds = array<i64: 1, 8, 32>}, {transform_indices = @transform_2, window_bounds = array<i64: 1, 1, 8>}, {pipeline_mode = #tpu.pipeline_mode<synchronous>, transform_indices = @transform_3, window_bounds = array<i64: 32, 32>}, {pipeline_mode = #tpu.pipeline_mode<synchronous>, transform_indices = @transform_4, window_bounds = array<i64: 1, 32>}, {pipeline_mode = #tpu.pipeline_mode<synchronous>, transform_indices = @transform_5, window_bounds = array<i64: 32, 64>}, {pipeline_mode = #tpu.pipeline_mode<synchronous>, transform_indices = @transform_6, window_bounds = array<i64: 1, 64>}, {transform_indices = @transform_7, window_bounds = array<i64: 1, 8, 32>}]} {
    %c0_i32 = arith.constant 0 : i32
    %0 = arith.cmpi eq, %arg1, %c0_i32 : i32
    %1 = arith.extui %0 : i1 to i32
    %c0_i32_0 = arith.constant 0 : i32
    %2 = arith.cmpi ne, %1, %c0_i32_0 : i32
    scf.if %2 {
      %c0_36 = arith.constant 0 : index
      %c0_37 = arith.constant 0 : index
      %c0_38 = arith.constant 0 : index
      %87 = vector.load %arg3[%c0_36, %c0_37, %c0_38] : memref<1x8x32xf32, #tpu.memory_space<vmem>>, vector<1x8x32xf32>
      %88 = vector.shape_cast %87 : vector<1x8x32xf32> to vector<8x32xf32>
      %c0_39 = arith.constant 0 : index
      %c0_40 = arith.constant 0 : index
      %89 = vector.load %arg7[%c0_39, %c0_40] : memref<32x64xf32, #tpu.memory_space<vmem>>, vector<32x64xf32>
      %cst_41 = arith.constant dense<0.000000e+00> : vector<8x64xf32>
      %90 = tpu.matmul %88, %89, %cst_41 {dimension_numbers = #tpu.dot_dimension_numbers<[1], [0], [0], [1], [0, 0, 1, 1], [], []>} : vector<8x32xf32>, vector<32x64xf32>, vector<8x64xf32> -> vector<8x64xf32>
      %c0_42 = arith.constant 0 : index
      %c0_43 = arith.constant 0 : index
      %91 = vector.load %arg8[%c0_42, %c0_43] : memref<1x64xf32, #tpu.memory_space<vmem>>, vector<1x64xf32>
      %92 = vector.broadcast %91 : vector<1x64xf32> to vector<8x64xf32>
      %93 = arith.addf %90, %92 : vector<8x64xf32>
      %c0_44 = arith.constant 0 : index
      %c0_45 = arith.constant 0 : index
      %94 = vector.load %arg10[%c0_44, %c0_45] : memref<8x64xf32, #tpu.memory_space<vmem>>, vector<8x64xf32>
      tpu.vector_store %arg10[%c0_44, %c0_45], %93 {strides = array<i32>} : memref<8x64xf32, #tpu.memory_space<vmem>>, vector<8x64xf32>,
    } else {
    }
    %c0 = arith.constant 0 : index
    %c0_1 = arith.constant 0 : index
    %c0_2 = arith.constant 0 : index
    %3 = vector.load %arg2[%c0, %c0_1, %c0_2] : memref<1x8x32xf32, #tpu.memory_space<vmem>>, vector<1x8x32xf32>
    %4 = vector.shape_cast %3 : vector<1x8x32xf32> to vector<8x32xf32>
    %c0_3 = arith.constant 0 : index
    %c0_4 = arith.constant 0 : index
    %5 = vector.load %arg5[%c0_3, %c0_4] : memref<32x32xf32, #tpu.memory_space<vmem>>, vector<32x32xf32>
    %cst = arith.constant dense<0.000000e+00> : vector<8x32xf32>
    %6 = tpu.matmul %4, %5, %cst {dimension_numbers = #tpu.dot_dimension_numbers<[1], [0], [0], [1], [0, 0, 1, 1], [], []>} : vector<8x32xf32>, vector<32x32xf32>, vector<8x32xf32> -> vector<8x32xf32>
    %c0_5 = arith.constant 0 : index
    %c0_6 = arith.constant 0 : index
    %7 = vector.load %arg6[%c0_5, %c0_6] : memref<1x32xf32, #tpu.memory_space<vmem>>, vector<1x32xf32>
    %8 = vector.broadcast %7 : vector<1x32xf32> to vector<8x32xf32>
    %9 = arith.addf %6, %8 : vector<8x32xf32>
    %c0_7 = arith.constant 0 : index
    %c0_8 = arith.constant 0 : index
    %10 = vector.load %arg10[%c0_7, %c0_8] : memref<8x64xf32, #tpu.memory_space<vmem>>, vector<8x64xf32>
    %c0_9 = arith.constant 0 : index
    %c0_10 = arith.constant 0 : index
    %c0_11 = arith.constant 0 : index
    %11 = vector.load %arg4[%c0_9, %c0_10, %c0_11] : memref<1x1x8xf32, #tpu.memory_space<vmem>>, vector<1x1x8xf32>
    %12 = vector.shape_cast %11 : vector<1x1x8xf32> to vector<1x8xf32>
    %13 = vector.shape_cast %12 : vector<1x8xf32> to vector<1x8xf32>
    %14 = vector.broadcast %13 : vector<1x8xf32> to vector<8x8xf32>
    %15 = vector.extract_strided_slice %9 {offsets = [0, 0], sizes = [8, 8], strides = [1, 1]} : vector<8x32xf32> to vector<8x8xf32>
    %16 = vector.extract_strided_slice %10 {offsets = [0, 0], sizes = [8, 8], strides = [1, 1]} : vector<8x64xf32> to vector<8x8xf32>
    %17 = vector.extract_strided_slice %10 {offsets = [0, 32], sizes = [8, 8], strides = [1, 1]} : vector<8x64xf32> to vector<8x8xf32>
    %cst_12 = arith.constant dense<0.000000e+00> : vector<8x8xf32>
    %18 = tpu.matmul %15, %16, %cst_12 {dimension_numbers = #tpu.dot_dimension_numbers<[1], [1], [0], [0], [0, 0, 1, 0], [], []>} : vector<8x8xf32>, vector<8x8xf32>, vector<8x8xf32> -> vector<8x8xf32>
    %19 = arith.addf %18, %14 : vector<8x8xf32>
    %cst_13 = arith.constant dense<0xFF800000> : vector<8xf32>
    %20 = vector.multi_reduction <maximumf>, %19, %cst_13 [1] : vector<8x8xf32> to vector<8xf32>
    %21 = vector.shape_cast %20 : vector<8xf32> to vector<8x1xf32>
    %22 = vector.broadcast %21 : vector<8x1xf32> to vector<8x8xf32>
    %23 = arith.subf %19, %22 : vector<8x8xf32>
    %24 = math.exp %23 : vector<8x8xf32>
    %cst_14 = arith.constant dense<0.000000e+00> : vector<8xf32>
    %25 = vector.multi_reduction <add>, %24, %cst_14 [1] : vector<8x8xf32> to vector<8xf32>
    %26 = vector.shape_cast %25 : vector<8xf32> to vector<8x1xf32>
    %27 = tpu.reciprocal %26 {approx = true} : vector<8x1xf32> -> vector<8x1xf32>
    %28 = vector.broadcast %27 : vector<8x1xf32> to vector<8x8xf32>
    %29 = arith.mulf %24, %28 : vector<8x8xf32>
    %cst_15 = arith.constant dense<0.000000e+00> : vector<8x8xf32>
    %30 = tpu.matmul %29, %17, %cst_15 {dimension_numbers = #tpu.dot_dimension_numbers<[1], [0], [0], [1], [0, 0, 1, 1], [], []>} : vector<8x8xf32>, vector<8x8xf32>, vector<8x8xf32> -> vector<8x8xf32>
    %31 = vector.extract_strided_slice %9 {offsets = [0, 8], sizes = [8, 8], strides = [1, 1]} : vector<8x32xf32> to vector<8x8xf32>
    %32 = vector.extract_strided_slice %10 {offsets = [0, 8], sizes = [8, 8], strides = [1, 1]} : vector<8x64xf32> to vector<8x8xf32>
    %33 = vector.extract_strided_slice %10 {offsets = [0, 40], sizes = [8, 8], strides = [1, 1]} : vector<8x64xf32> to vector<8x8xf32>
    %cst_16 = arith.constant dense<0.000000e+00> : vector<8x8xf32>
    %34 = tpu.matmul %31, %32, %cst_16 {dimension_numbers = #tpu.dot_dimension_numbers<[1], [1], [0], [0], [0, 0, 1, 0], [], []>} : vector<8x8xf32>, vector<8x8xf32>, vector<8x8xf32> -> vector<8x8xf32>
    %35 = arith.addf %34, %14 : vector<8x8xf32>
    %cst_17 = arith.constant dense<0xFF800000> : vector<8xf32>
    %36 = vector.multi_reduction <maximumf>, %35, %cst_17 [1] : vector<8x8xf32> to vector<8xf32>
    %37 = vector.shape_cast %36 : vector<8xf32> to vector<8x1xf32>
    %38 = vector.broadcast %37 : vector<8x1xf32> to vector<8x8xf32>
    %39 = arith.subf %35, %38 : vector<8x8xf32>
    %40 = math.exp %39 : vector<8x8xf32>
    %cst_18 = arith.constant dense<0.000000e+00> : vector<8xf32>
    %41 = vector.multi_reduction <add>, %40, %cst_18 [1] : vector<8x8xf32> to vector<8xf32>
    %42 = vector.shape_cast %41 : vector<8xf32> to vector<8x1xf32>
    %43 = tpu.reciprocal %42 {approx = true} : vector<8x1xf32> -> vector<8x1xf32>
    %44 = vector.broadcast %43 : vector<8x1xf32> to vector<8x8xf32>
    %45 = arith.mulf %40, %44 : vector<8x8xf32>
    %cst_19 = arith.constant dense<0.000000e+00> : vector<8x8xf32>
    %46 = tpu.matmul %45, %33, %cst_19 {dimension_numbers = #tpu.dot_dimension_numbers<[1], [0], [0], [1], [0, 0, 1, 1], [], []>} : vector<8x8xf32>, vector<8x8xf32>, vector<8x8xf32> -> vector<8x8xf32>
    %47 = tpu.concatenate %30, %46 in 1 : vector<8x8xf32>, vector<8x8xf32> -> vector<8x16xf32>
    %c0_20 = arith.constant 0 : index
    %c0_21 = arith.constant 0 : index
    %48 = vector.load %arg11[%c0_20, %c0_21] : memref<8x32xf32, #tpu.memory_space<vmem>>, vector<8x16xf32>
    tpu.vector_store %arg11[%c0_20, %c0_21], %47 {strides = array<i32>} : memref<8x32xf32, #tpu.memory_space<vmem>>, vector<8x16xf32>,
    %49 = vector.extract_strided_slice %9 {offsets = [0, 16], sizes = [8, 8], strides = [1, 1]} : vector<8x32xf32> to vector<8x8xf32>
    %50 = vector.extract_strided_slice %10 {offsets = [0, 16], sizes = [8, 8], strides = [1, 1]} : vector<8x64xf32> to vector<8x8xf32>
    %51 = vector.extract_strided_slice %10 {offsets = [0, 48], sizes = [8, 8], strides = [1, 1]} : vector<8x64xf32> to vector<8x8xf32>
    %cst_22 = arith.constant dense<0.000000e+00> : vector<8x8xf32>
    %52 = tpu.matmul %49, %50, %cst_22 {dimension_numbers = #tpu.dot_dimension_numbers<[1], [1], [0], [0], [0, 0, 1, 0], [], []>} : vector<8x8xf32>, vector<8x8xf32>, vector<8x8xf32> -> vector<8x8xf32>
    %53 = arith.addf %52, %14 : vector<8x8xf32>
    %cst_23 = arith.constant dense<0xFF800000> : vector<8xf32>
    %54 = vector.multi_reduction <maximumf>, %53, %cst_23 [1] : vector<8x8xf32> to vector<8xf32>
    %55 = vector.shape_cast %54 : vector<8xf32> to vector<8x1xf32>
    %56 = vector.broadcast %55 : vector<8x1xf32> to vector<8x8xf32>
    %57 = arith.subf %53, %56 : vector<8x8xf32>
    %58 = math.exp %57 : vector<8x8xf32>
    %cst_24 = arith.constant dense<0.000000e+00> : vector<8xf32>
    %59 = vector.multi_reduction <add>, %58, %cst_24 [1] : vector<8x8xf32> to vector<8xf32>
    %60 = vector.shape_cast %59 : vector<8xf32> to vector<8x1xf32>
    %61 = tpu.reciprocal %60 {approx = true} : vector<8x1xf32> -> vector<8x1xf32>
    %62 = vector.broadcast %61 : vector<8x1xf32> to vector<8x8xf32>
    %63 = arith.mulf %58, %62 : vector<8x8xf32>
    %cst_25 = arith.constant dense<0.000000e+00> : vector<8x8xf32>
    %64 = tpu.matmul %63, %51, %cst_25 {dimension_numbers = #tpu.dot_dimension_numbers<[1], [0], [0], [1], [0, 0, 1, 1], [], []>} : vector<8x8xf32>, vector<8x8xf32>, vector<8x8xf32> -> vector<8x8xf32>
    %65 = vector.extract_strided_slice %9 {offsets = [0, 24], sizes = [8, 8], strides = [1, 1]} : vector<8x32xf32> to vector<8x8xf32>
    %66 = vector.extract_strided_slice %10 {offsets = [0, 24], sizes = [8, 8], strides = [1, 1]} : vector<8x64xf32> to vector<8x8xf32>
    %67 = vector.extract_strided_slice %10 {offsets = [0, 56], sizes = [8, 8], strides = [1, 1]} : vector<8x64xf32> to vector<8x8xf32>
    %cst_26 = arith.constant dense<0.000000e+00> : vector<8x8xf32>
    %68 = tpu.matmul %65, %66, %cst_26 {dimension_numbers = #tpu.dot_dimension_numbers<[1], [1], [0], [0], [0, 0, 1, 0], [], []>} : vector<8x8xf32>, vector<8x8xf32>, vector<8x8xf32> -> vector<8x8xf32>
    %69 = arith.addf %68, %14 : vector<8x8xf32>
    %cst_27 = arith.constant dense<0xFF800000> : vector<8xf32>
    %70 = vector.multi_reduction <maximumf>, %69, %cst_27 [1] : vector<8x8xf32> to vector<8xf32>
    %71 = vector.shape_cast %70 : vector<8xf32> to vector<8x1xf32>
    %72 = vector.broadcast %71 : vector<8x1xf32> to vector<8x8xf32>
    %73 = arith.subf %69, %72 : vector<8x8xf32>
    %74 = math.exp %73 : vector<8x8xf32>
    %cst_28 = arith.constant dense<0.000000e+00> : vector<8xf32>
    %75 = vector.multi_reduction <add>, %74, %cst_28 [1] : vector<8x8xf32> to vector<8xf32>
    %76 = vector.shape_cast %75 : vector<8xf32> to vector<8x1xf32>
    %77 = tpu.reciprocal %76 {approx = true} : vector<8x1xf32> -> vector<8x1xf32>
    %78 = vector.broadcast %77 : vector<8x1xf32> to vector<8x8xf32>
    %79 = arith.mulf %74, %78 : vector<8x8xf32>
    %cst_29 = arith.constant dense<0.000000e+00> : vector<8x8xf32>
    %80 = tpu.matmul %79, %67, %cst_29 {dimension_numbers = #tpu.dot_dimension_numbers<[1], [0], [0], [1], [0, 0, 1, 1], [], []>} : vector<8x8xf32>, vector<8x8xf32>, vector<8x8xf32> -> vector<8x8xf32>
    %81 = tpu.concatenate %64, %80 in 1 : vector<8x8xf32>, vector<8x8xf32> -> vector<8x16xf32>
    %c0_30 = arith.constant 0 : index
    %c16 = arith.constant 16 : index
    %82 = vector.load %arg11[%c0_30, %c16] : memref<8x32xf32, #tpu.memory_space<vmem>>, vector<8x16xf32>
    tpu.vector_store %arg11[%c0_30, %c16], %81 {strides = array<i32>} : memref<8x32xf32, #tpu.memory_space<vmem>>, vector<8x16xf32>,
    %c0_31 = arith.constant 0 : index
    %c0_32 = arith.constant 0 : index
    %83 = vector.load %arg11[%c0_31, %c0_32] : memref<8x32xf32, #tpu.memory_space<vmem>>, vector<8x32xf32>
    %c0_33 = arith.constant 0 : index
    %c0_34 = arith.constant 0 : index
    %c0_35 = arith.constant 0 : index
    %84 = vector.load %arg9[%c0_33, %c0_34, %c0_35] : memref<1x8x32xf32, #tpu.memory_space<vmem>>, vector<1x8x32xf32>
    %85 = vector.shape_cast %84 : vector<1x8x32xf32> to vector<8x32xf32>
    %86 = vector.shape_cast %83 : vector<8x32xf32> to vector<1x8x32xf32>
    tpu.vector_store %arg9[%c0_33, %c0_34, %c0_35], %86 {strides = array<i32>} : memref<1x8x32xf32, #tpu.memory_space<vmem>>, vector<1x8x32xf32>,
    return
  }
  func.func @transform_0(%arg0: i32, %arg1: i32) -> (i32, i32, i32) {
    %c0_i32 = arith.constant 0 : i32
    %c0_i32_0 = arith.constant 0 : i32
    return %arg0, %arg1, %c0_i32 : i32, i32, i32
  }
  func.func @transform_1(%arg0: i32, %arg1: i32) -> (i32, i32, i32) {
    %c0_i32 = arith.constant 0 : i32
    %c0_i32_0 = arith.constant 0 : i32
    %c0_i32_1 = arith.constant 0 : i32
    return %arg0, %c0_i32, %c0_i32_0 : i32, i32, i32
  }
  func.func @transform_2(%arg0: i32, %arg1: i32) -> (i32, i32, i32) {
    %c0_i32 = arith.constant 0 : i32
    %c0_i32_0 = arith.constant 0 : i32
    %c0_i32_1 = arith.constant 0 : i32
    return %arg0, %c0_i32, %c0_i32_0 : i32, i32, i32
  }
  func.func @transform_3(%arg0: i32, %arg1: i32) -> (i32, i32) {
    %c0_i32 = arith.constant 0 : i32
    %c0_i32_0 = arith.constant 0 : i32
    %c0_i32_1 = arith.constant 0 : i32
    return %c0_i32, %c0_i32_0 : i32, i32
  }
  func.func @transform_4(%arg0: i32, %arg1: i32) -> (i32, i32) {
    %c0_i32 = arith.constant 0 : i32
    %c0_i32_0 = arith.constant 0 : i32
    %c0_i32_1 = arith.constant 0 : i32
    return %c0_i32, %c0_i32_0 : i32, i32
  }
  func.func @transform_5(%arg0: i32, %arg1: i32) -> (i32, i32) {
    %c0_i32 = arith.constant 0 : i32
    %c0_i32_0 = arith.constant 0 : i32
    %c0_i32_1 = arith.constant 0 : i32
    return %c0_i32, %c0_i32_0 : i32, i32
  }
  func.func @transform_6(%arg0: i32, %arg1: i32) -> (i32, i32) {
    %c0_i32 = arith.constant 0 : i32
    %c0_i32_0 = arith.constant 0 : i32
    %c0_i32_1 = arith.constant 0 : i32
    return %c0_i32, %c0_i32_0 : i32, i32
  }
  func.func @transform_7(%arg0: i32, %arg1: i32) -> (i32, i32, i32) {
    %c0_i32 = arith.constant 0 : i32
    %c0_i32_0 = arith.constant 0 : i32
    return %arg0, %arg1, %c0_i32 : i32, i32, i32
  }
}

</mosaic_0001>

<llo_original>
// kernel: tpu_custom_call.1
$region0: #{tpu_custom_call.1}
  #allocation0 [shape = 'u32[]', space=smem, size = 0x4, offset = 0x4, fixed_abs, tag = 'smem constant byte address 0x4 - core index']
  #allocation1 [shape = 'u32[72,128]{1,0:T(1,128)}', space=vmem, size = 0x9000, scoped, tag = 'internal scratch']
  #allocation2 [shape = 'f32[8,64]{1,0:T(8,128)}', space=vmem, size = 0x1000, scoped, tag = 'scratch operand']
  #allocation3 [shape = 'f32[8,32]{1,0:T(8,128)}', space=vmem, size = 0x1000, scoped, tag = 'scratch operand']
  %s0 = inlined_call_operand.hbm [shape: f32[2,8,32], index: 0, kind: input, shape index: {}]
  %s1 = inlined_call_operand.hbm [shape: f32[2,8,32], index: 1, kind: input, shape index: {}]
  %s2 = inlined_call_operand.hbm [shape: f32[2,1,8], index: 2, kind: input, shape index: {}]
  %s3 = inlined_call_operand.hbm [shape: f32[32,32], index: 3, kind: input, shape index: {}]
  %s4 = inlined_call_operand.vmem [shape: f32[1,32], index: 4, kind: input, shape index: {}]
  %s5 = inlined_call_operand.hbm [shape: f32[32,64], index: 5, kind: input, shape index: {}]
  %s6 = inlined_call_operand.vmem [shape: f32[1,64], index: 6, kind: input, shape index: {}]
  %s7 = inlined_call_operand.hbm [shape: f32[2,8,32], index: 7, kind: output, shape index: {}]
  %s8 = sld [smem:[#allocation0]]
  $region85: #{tpu_custom_call.1} parent=0
    _
  %s10 = ssub.s32 1, %s8
  %s11 = scalar_select 0, %s10, %s8
  $region1: #{tpu_custom_call.1} parent=0
    #allocation4 [shape = 'u8[8192]{0}', space=vmem, size = 0x2000, scoped, tag = 'input window, operand 0']
    #allocation5 [shape = 's32[2]{0}', space=sflag, size = 0x8, scoped, tag = 'scoped memory for tpu_custom_call.1']
    #allocation6 [shape = 's32[2]{0}', space=sflag, size = 0x8, scoped, tag = 'scoped memory for tpu_custom_call.1']
    #allocation7 [shape = 'u8[8192]{0}', space=vmem, size = 0x2000, scoped, tag = 'input window, operand 1']
    #allocation8 [shape = 's32[2]{0}', space=sflag, size = 0x8, scoped, tag = 'scoped memory for tpu_custom_call.1']
    #allocation9 [shape = 'u8[1024]{0}', space=vmem, size = 0x400, scoped, tag = 'input window, operand 2']
    #allocation10 [shape = 'u8[16384]{0}', space=vmem, size = 0x4000, scoped, tag = 'input window, operand 3, single buffered']
    #allocation11 [shape = 's32[1]{0}', space=sflag, size = 0x4, scoped, tag = 'scoped memory for tpu_custom_call.1']
    #allocation12 [shape = 'u8[16384]{0}', space=vmem, size = 0x4000, scoped, tag = 'input window, operand 5, single buffered']
    #allocation13 [shape = 'u8[8192]{0}', space=vmem, size = 0x2000, scoped, tag = 'output window, operand 0']
    %12 = vsyncpa [#allocation5], 0
    %s13 = scalar_lea.sflag [#allocation5], 1
    %14 = vsyncpa %s13, 0
    %15 = vsyncpa [#allocation8], 0
    %s16 = scalar_lea.sflag [#allocation8], 1
    %17 = vsyncpa %s16, 0
    %18 = vsyncpa [#allocation11], 0
    %19 = vsyncpa [#allocation6], 0
    %s20 = scalar_lea.sflag [#allocation6], 1
    %21 = vsyncpa %s20, 0
    loop: start=0, step=1, limit=4
    $region2: #{tpu_custom_call.1} parent=1 // loop_pre_header
      _
    $region3: #{tpu_custom_call.1} parent=1 // loop_header
      %s23 = sphi 0, %s27
      %p24 = scmp.ge.s32.totalorder %s23, 4
      %s30 = sphi 0, %s42
      %s31 = sphi 0, %s38
      %s32 = sphi 0, %s30
      %s33 = sphi 0, %s31
      %s34 = sphi 0, %s32
      %s35 = sphi 0, %s33
      %s47 = sphi 0, %s49
      %s50 = sphi 0, %s47
      %s51 = sphi 0, %s50
      %s67 = sphi 0, %s51
      %s73 = sphi 0, %s75
      %s76 = sphi 0, %s73
      %s77 = sphi 0, %s76
      %s93 = sphi 0, %s77
      %s99 = sphi 0, %s101
      %s102 = sphi 0, %s99
      %s103 = sphi 0, %s102
      %s119 = sphi 0, %s103
      %s123 = sphi 0, %s123
      %s125 = sphi 0, %s123
      %s126 = sphi 0, %s125
      %s140 = sphi 0, %s126
      %s144 = sphi 0, %s144
      %s146 = sphi 0, %s144
      %s147 = sphi 0, %s146
      %s161 = sphi 0, %s147
      %s165 = sphi 0, %s165
      %s167 = sphi 0, %s165
      %s168 = sphi 0, %s167
      %s182 = sphi 0, %s168
      %s186 = sphi 0, %s186
      %s188 = sphi 0, %s186
      %s189 = sphi 0, %s188
      %s203 = sphi 0, %s189
      %s211 = sphi 0, %s213
      %s214 = sphi 0, %s211
      %s215 = sphi 0, %s214
      %s231 = sphi 0, %s215
    $region4: #{tpu_custom_call.1} parent=1 // loop_header_branch
      %26 = sbr.rel (%p24) target = $region8
    $region5: #{tpu_custom_call.1} parent=1 // loop_body
      %s28 = ssub.s32 %s23, 1
      %s29 = ssub.s32 %s23, 2
      %s36 = sadd.s32 1, %s31
      %p37 = scmp.ge.s32.totalorder %s36, 1
      %s38 = scalar_select %p37, 0, %s36
      %s39 = sadd.s32 1, %s30
      %s40 = scalar_select %p37, %s39, %s30
      %p41 = scmp.ge.s32.totalorder %s40, 2
      %s42 = scalar_select %p41, 0, %s40
      %s43 = ssub.s32 %s30, %s42
      %s44 = ssub.s32 %s31, %s38
      %s45 = sor.u32 %s43, %s44
      %p46 = scmp.eq.s32.totalorder %s45, 0
      %s48 = sadd.s32 %s47, 1
      %s49 = scalar_select %p46, %s47, %s48
      %p52 = pneg %p46
      %p53 = scmp.eq.s32.totalorder %s23, 1
      %p54 = por %p52, %p53
      %p55 = scmp.ne.s32.totalorder %s47, %s50
      %p56 = scmp.eq.s32.totalorder %s23, 0
      %p57 = por %p55, %p56
      %p58 = scmp.ne.s32.totalorder %s47, %s50
      %p59 = scmp.eq.s32.totalorder %s28, 1
      %p60 = por %p58, %p59
      %p61 = scmp.ne.s32.totalorder %s50, %s51
      %p62 = scmp.eq.s32.totalorder %s28, 0
      %p63 = por %p61, %p62
      %p64 = scmp.ne.s32.totalorder %s50, %s51
      %p65 = scmp.eq.s32.totalorder %s29, 1
      %p66 = por %p64, %p65
      %p68 = scmp.ne.s32.totalorder %s51, %s67
      %p69 = scmp.eq.s32.totalorder %s29, 0
      %p70 = por %p68, %p69
      %s71 = ssub.s32 %s30, %s42
      %p72 = scmp.eq.s32.totalorder %s71, 0
      %s74 = sadd.s32 %s73, 1
      %s75 = scalar_select %p72, %s73, %s74
      %p78 = pneg %p72
      %p79 = scmp.eq.s32.totalorder %s23, 1
      %p80 = por %p78, %p79
      %p81 = scmp.ne.s32.totalorder %s73, %s76
      %p82 = scmp.eq.s32.totalorder %s23, 0
      %p83 = por %p81, %p82
      %p84 = scmp.ne.s32.totalorder %s73, %s76
      %p85 = scmp.eq.s32.totalorder %s28, 1
      %p86 = por %p84, %p85
      %p87 = scmp.ne.s32.totalorder %s76, %s77
      %p88 = scmp.eq.s32.totalorder %s28, 0
      %p89 = por %p87, %p88
      %p90 = scmp.ne.s32.totalorder %s76, %s77
      %p91 = scmp.eq.s32.totalorder %s29, 1
      %p92 = por %p90, %p91
      %p94 = scmp.ne.s32.totalorder %s77, %s93
      %p95 = scmp.eq.s32.totalorder %s29, 0
      %p96 = por %p94, %p95
      %s97 = ssub.s32 %s30, %s42
      %p98 = scmp.eq.s32.totalorder %s97, 0
      %s100 = sadd.s32 %s99, 1
      %s101 = scalar_select %p98, %s99, %s100
      %p104 = pneg %p98
      %p105 = scmp.eq.s32.totalorder %s23, 1
      %p106 = por %p104, %p105
      %p107 = scmp.ne.s32.totalorder %s99, %s102
      %p108 = scmp.eq.s32.totalorder %s23, 0
      %p109 = por %p107, %p108
      %p110 = scmp.ne.s32.totalorder %s99, %s102
      %p111 = scmp.eq.s32.totalorder %s28, 1
      %p112 = por %p110, %p111
      %p113 = scmp.ne.s32.totalorder %s102, %s103
      %p114 = scmp.eq.s32.totalorder %s28, 0
      %p115 = por %p113, %p114
      %p116 = scmp.ne.s32.totalorder %s102, %s103
      %p117 = scmp.eq.s32.totalorder %s29, 1
      %p118 = por %p116, %p117
      %p120 = scmp.ne.s32.totalorder %s103, %s119
      %p121 = scmp.eq.s32.totalorder %s29, 0
      %p122 = por %p120, %p121
      %s124 = sadd.s32 %s123, 1
      %p127 = scmp.eq.s32.totalorder %s23, 1
      %p128 = scmp.ne.s32.totalorder %s123, %s125
      %p129 = scmp.eq.s32.totalorder %s23, 0
      %p130 = por %p128, %p129
      %p131 = scmp.ne.s32.totalorder %s123, %s125
      %p132 = scmp.eq.s32.totalorder %s28, 1
      %p133 = por %p131, %p132
      %p134 = scmp.ne.s32.totalorder %s125, %s126
      %p135 = scmp.eq.s32.totalorder %s28, 0
      %p136 = por %p134, %p135
      %p137 = scmp.ne.s32.totalorder %s125, %s126
      %p138 = scmp.eq.s32.totalorder %s29, 1
      %p139 = por %p137, %p138
      %p141 = scmp.ne.s32.totalorder %s126, %s140
      %p142 = scmp.eq.s32.totalorder %s29, 0
      %p143 = por %p141, %p142
      %s145 = sadd.s32 %s144, 1
      %p148 = scmp.eq.s32.totalorder %s23, 1
      %p149 = scmp.ne.s32.totalorder %s144, %s146
      %p150 = scmp.eq.s32.totalorder %s23, 0
      %p151 = por %p149, %p150
      %p152 = scmp.ne.s32.totalorder %s144, %s146
      %p153 = scmp.eq.s32.totalorder %s28, 1
      %p154 = por %p152, %p153
      %p155 = scmp.ne.s32.totalorder %s146, %s147
      %p156 = scmp.eq.s32.totalorder %s28, 0
      %p157 = por %p155, %p156
      %p158 = scmp.ne.s32.totalorder %s146, %s147
      %p159 = scmp.eq.s32.totalorder %s29, 1
      %p160 = por %p158, %p159
      %p162 = scmp.ne.s32.totalorder %s147, %s161
      %p163 = scmp.eq.s32.totalorder %s29, 0
      %p164 = por %p162, %p163
      %s166 = sadd.s32 %s165, 1
      %p169 = scmp.eq.s32.totalorder %s23, 1
      %p170 = scmp.ne.s32.totalorder %s165, %s167
      %p171 = scmp.eq.s32.totalorder %s23, 0
      %p172 = por %p170, %p171
      %p173 = scmp.ne.s32.totalorder %s165, %s167
      %p174 = scmp.eq.s32.totalorder %s28, 1
      %p175 = por %p173, %p174
      %p176 = scmp.ne.s32.totalorder %s167, %s168
      %p177 = scmp.eq.s32.totalorder %s28, 0
      %p178 = por %p176, %p177
      %p179 = scmp.ne.s32.totalorder %s167, %s168
      %p180 = scmp.eq.s32.totalorder %s29, 1
      %p181 = por %p179, %p180
      %p183 = scmp.ne.s32.totalorder %s168, %s182
      %p184 = scmp.eq.s32.totalorder %s29, 0
      %p185 = por %p183, %p184
      %s187 = sadd.s32 %s186, 1
      %p190 = scmp.eq.s32.totalorder %s23, 1
      %p191 = scmp.ne.s32.totalorder %s186, %s188
      %p192 = scmp.eq.s32.totalorder %s23, 0
      %p193 = por %p191, %p192
      %p194 = scmp.ne.s32.totalorder %s186, %s188
      %p195 = scmp.eq.s32.totalorder %s28, 1
      %p196 = por %p194, %p195
      %p197 = scmp.ne.s32.totalorder %s188, %s189
      %p198 = scmp.eq.s32.totalorder %s28, 0
      %p199 = por %p197, %p198
      %p200 = scmp.ne.s32.totalorder %s188, %s189
      %p201 = scmp.eq.s32.totalorder %s29, 1
      %p202 = por %p200, %p201
      %p204 = scmp.ne.s32.totalorder %s189, %s203
      %p205 = scmp.eq.s32.totalorder %s29, 0
      %p206 = por %p204, %p205
      %s207 = ssub.s32 %s30, %s42
      %s208 = ssub.s32 %s31, %s38
      %s209 = sor.u32 %s207, %s208
      %p210 = scmp.eq.s32.totalorder %s209, 0
      %s212 = sadd.s32 %s211, 1
      %s213 = scalar_select %p210, %s211, %s212
      %p216 = pneg %p210
      %p217 = scmp.eq.s32.totalorder %s23, 1
      %p218 = por %p216, %p217
      %p219 = scmp.ne.s32.totalorder %s211, %s214
      %p220 = scmp.eq.s32.totalorder %s23, 0
      %p221 = por %p219, %p220
      %p222 = scmp.ne.s32.totalorder %s211, %s214
      %p223 = scmp.eq.s32.totalorder %s28, 1
      %p224 = por %p222, %p223
      %p225 = scmp.ne.s32.totalorder %s214, %s215
      %p226 = scmp.eq.s32.totalorder %s28, 0
      %p227 = por %p225, %p226
      %p228 = scmp.ne.s32.totalorder %s214, %s215
      %p229 = scmp.eq.s32.totalorder %s29, 1
      %p230 = por %p228, %p229
      %p232 = scmp.ne.s32.totalorder %s215, %s231
      %p233 = scmp.eq.s32.totalorder %s29, 0
      %p234 = por %p232, %p233
      %p235 = scmp.le.s32.totalorder 1, %s23
      %p236 = scmp.lt.s32.totalorder %s23, 3
      %p237 = pnand %p235, %p236
      %p238 = pneg %p237
      // Predicated region
      $region9: #{tpu_custom_call.1} parent=5 // pred_check
        _
      $region10: #{tpu_custom_call.1} parent=5 // pred_check_branch
        %240 = sbr.rel (%p237) target = $region12
      $region11: #{tpu_custom_call.1} parent=5 // pred_region
        %s241 = ssub.s32 %s23, 1
        // Predicated region
        $region13: #{tpu_custom_call.1} parent=11 // pred_check
          %p242 = pneg %p136
        $region14: #{tpu_custom_call.1} parent=11 // pred_check_branch
          %244 = sbr.rel (%p242) target = $region16
        $region15: #{tpu_custom_call.1} parent=11 // pred_region
          %246 = vsyncadd [#allocation11], 0
          %s247 = sshll.u32 %s3, 4
          %s248 = int_to_ptr.hbm [resolvable:$true] %s247
          %s249 = sshll.u32 [#allocation10], 4
          %s250 = int_to_ptr.vmem [resolvable:$true] %s249
          %255 = dma.hbm_to_vmem [thread:$0]  %s248, 512, %s250, [#allocation11], 128, 128, 8
        $region16: #{tpu_custom_call.1} parent=11 // pred_fallthru
          _
        // Predicated region
        $region17: #{tpu_custom_call.1} parent=11 // pred_check
          %p256 = pneg %p157
        $region18: #{tpu_custom_call.1} parent=11 // pred_check_branch
          %258 = sbr.rel (%p256) target = $region20
        $region19: #{tpu_custom_call.1} parent=11 // pred_region
          _
        $region20: #{tpu_custom_call.1} parent=11 // pred_fallthru
          _
        // Predicated region
        $region21: #{tpu_custom_call.1} parent=11 // pred_check
          %p259 = pneg %p178
        $region22: #{tpu_custom_call.1} parent=11 // pred_check_branch
          %261 = sbr.rel (%p259) target = $region24
        $region23: #{tpu_custom_call.1} parent=11 // pred_region
          %263 = vsyncadd [#allocation11], 0
          %s264 = sshll.u32 %s5, 4
          %s265 = int_to_ptr.hbm [resolvable:$true] %s264
          %s266 = sshll.u32 [#allocation12], 4
          %s267 = int_to_ptr.vmem [resolvable:$true] %s266
          %272 = dma.hbm_to_vmem [thread:$0]  %s265, 512, %s267, [#allocation11], 128, 128, 8
        $region24: #{tpu_custom_call.1} parent=11 // pred_fallthru
          _
        // Predicated region
        $region25: #{tpu_custom_call.1} parent=11 // pred_check
          %p273 = pneg %p199
        $region26: #{tpu_custom_call.1} parent=11 // pred_check_branch
          %275 = sbr.rel (%p273) target = $region28
        $region27: #{tpu_custom_call.1} parent=11 // pred_region
          _
        $region28: #{tpu_custom_call.1} parent=11 // pred_fallthru
          _
      $region12: #{tpu_custom_call.1} parent=5 // pred_fallthru
        _
      %p276 = scmp.lt.s32.totalorder %s23, 2
      // Predicated region
      $region29: #{tpu_custom_call.1} parent=5 // pred_check
        %p277 = pneg %p276
      $region30: #{tpu_custom_call.1} parent=5 // pred_check_branch
        %279 = sbr.rel (%p277) target = $region32
      $region31: #{tpu_custom_call.1} parent=5 // pred_region
        // Predicated region
        $region33: #{tpu_custom_call.1} parent=31 // pred_check
          %p280 = pneg %p57
        $region34: #{tpu_custom_call.1} parent=31 // pred_check_branch
          %282 = sbr.rel (%p280) target = $region36
        $region35: #{tpu_custom_call.1} parent=31 // pred_region
          %s283 = sand.u32 %s47, 1
          %s284 = scalar_lea.sflag [#allocation5], %s283
          %s285 = sand.u32 %s47, 1
          %s286 = smul.addr %s285, 8
          %s287 = scalar_lea.vmem [#allocation4], %s286
          %289 = vsyncadd %s284, 0
          %s290 = sadd.s32 %s31, %s30
          %s291 = smul.addr %s290, 8
          %s292 = scalar_lea.hbm %s0, %s291
          %s294 = sshll.u32 %s292, 4
          %s295 = int_to_ptr.hbm [resolvable:$true] %s294
          %s296 = sshll.u32 %s287, 4
          %s297 = int_to_ptr.vmem [resolvable:$true] %s296
          %299 = dma.hbm_to_vmem [thread:$0]  %s295, 128, %s297, %s284
        $region36: #{tpu_custom_call.1} parent=31 // pred_fallthru
          _
        // Predicated region
        $region37: #{tpu_custom_call.1} parent=31 // pred_check
          %p300 = pneg %p83
        $region38: #{tpu_custom_call.1} parent=31 // pred_check_branch
          %302 = sbr.rel (%p300) target = $region40
        $region39: #{tpu_custom_call.1} parent=31 // pred_region
          %s303 = sand.u32 %s23, 1
          %s304 = scalar_lea.sflag [#allocation8], %s303
          %s305 = sand.u32 %s73, 1
          %s306 = smul.addr %s305, 8
          %s307 = scalar_lea.vmem [#allocation7], %s306
          %309 = vsyncadd %s304, 0
          %s310 = smul.addr %s30, 8
          %s311 = scalar_lea.hbm %s1, %s310
          %s313 = sshll.u32 %s311, 4
          %s314 = int_to_ptr.hbm [resolvable:$true] %s313
          %s315 = sshll.u32 %s307, 4
          %s316 = int_to_ptr.vmem [resolvable:$true] %s315
          %318 = dma.hbm_to_vmem [thread:$0]  %s314, 128, %s316, %s304
        $region40: #{tpu_custom_call.1} parent=31 // pred_fallthru
          _
        // Predicated region
        $region41: #{tpu_custom_call.1} parent=31 // pred_check
          %p319 = pneg %p109
        $region42: #{tpu_custom_call.1} parent=31 // pred_check_branch
          %321 = sbr.rel (%p319) target = $region44
        $region43: #{tpu_custom_call.1} parent=31 // pred_region
          %s322 = sand.u32 %s23, 1
          %s323 = scalar_lea.sflag [#allocation8], %s322
          %s324 = sand.u32 %s99, 1
          %s325 = scalar_lea.vmem [#allocation9], %s324
          %327 = vsyncadd %s323, 0
          %s328 = scalar_lea.hbm %s2, %s30
          %s330 = sshll.u32 %s328, 4
          %s331 = int_to_ptr.hbm [resolvable:$true] %s330
          %s332 = sshll.u32 %s325, 4
          %s333 = int_to_ptr.vmem [resolvable:$true] %s332
          %335 = dma.hbm_to_vmem [thread:$0]  %s331, 16, %s333, %s323
        $region44: #{tpu_custom_call.1} parent=31 // pred_fallthru
          _
      $region32: #{tpu_custom_call.1} parent=5 // pred_fallthru
        _
      %p336 = scmp.le.s32.totalorder 1, %s23
      %p337 = scmp.lt.s32.totalorder %s23, 3
      %p338 = pnand %p336, %p337
      %p339 = pneg %p338
      // Predicated region
      $region45: #{tpu_custom_call.1} parent=5 // pred_check
        _
      $region46: #{tpu_custom_call.1} parent=5 // pred_check_branch
        %341 = sbr.rel (%p338) target = $region48
      $region47: #{tpu_custom_call.1} parent=5 // pred_region
        %s342 = ssub.s32 %s23, 1
        %s343 = sand.u32 %s50, 1
        %s344 = scalar_lea.sflag [#allocation5], %s343
        %s345 = sand.u32 %s50, 1
        %s346 = smul.addr %s345, 8
        %s347 = scalar_lea.vmem [#allocation4], %s346
        // Predicated region
        $region49: #{tpu_custom_call.1} parent=47 // pred_check
          %p348 = pneg %p63
        $region50: #{tpu_custom_call.1} parent=47 // pred_check_branch
          %350 = sbr.rel (%p348) target = $region52
        $region51: #{tpu_custom_call.1} parent=47 // pred_region
          %352 = dma.done %s344, 128
        $region52: #{tpu_custom_call.1} parent=47 // pred_fallthru
          _
        %s353 = sand.u32 %s28, 1
        %s354 = scalar_lea.sflag [#allocation8], %s353
        %s355 = sand.u32 %s76, 1
        %s356 = smul.addr %s355, 8
        %s357 = scalar_lea.vmem [#allocation7], %s356
        // Predicated region
        $region53: #{tpu_custom_call.1} parent=47 // pred_check
          %p358 = pneg %p89
        $region54: #{tpu_custom_call.1} parent=47 // pred_check_branch
          %360 = sbr.rel (%p358) target = $region56
        $region55: #{tpu_custom_call.1} parent=47 // pred_region
          %362 = dma.done %s354, 128
        $region56: #{tpu_custom_call.1} parent=47 // pred_fallthru
          _
        %s363 = sand.u32 %s28, 1
        %s364 = scalar_lea.sflag [#allocation8], %s363
        %s365 = sand.u32 %s102, 1
        %s366 = scalar_lea.vmem [#allocation9], %s365
        // Predicated region
        $region57: #{tpu_custom_call.1} parent=47 // pred_check
          %p367 = pneg %p115
        $region58: #{tpu_custom_call.1} parent=47 // pred_check_branch
          %369 = sbr.rel (%p367) target = $region60
        $region59: #{tpu_custom_call.1} parent=47 // pred_region
          %371 = dma.done %s364, 16
        $region60: #{tpu_custom_call.1} parent=47 // pred_fallthru
          _
        // Predicated region
        $region61: #{tpu_custom_call.1} parent=47 // pred_check
          %p372 = pneg %p136
        $region62: #{tpu_custom_call.1} parent=47 // pred_check_branch
          %374 = sbr.rel (%p372) target = $region64
        $region63: #{tpu_custom_call.1} parent=47 // pred_region
          %376 = dma.done [#allocation11], 512
        $region64: #{tpu_custom_call.1} parent=47 // pred_fallthru
          _
        // Predicated region
        $region65: #{tpu_custom_call.1} parent=47 // pred_check
          %p377 = pneg %p178
        $region66: #{tpu_custom_call.1} parent=47 // pred_check_branch
          %379 = sbr.rel (%p377) target = $region68
        $region67: #{tpu_custom_call.1} parent=47 // pred_region
          %381 = dma.done [#allocation11], 512
        $region68: #{tpu_custom_call.1} parent=47 // pred_fallthru
          _
        %s382 = sand.u32 %s50, 1
        %s383 = scalar_lea.sflag [#allocation5], %s382
        %s384 = sand.u32 %s50, 1
        %s385 = smul.addr %s384, 8
        %s386 = scalar_lea.vmem [#allocation4], %s385
        %p387 = pneg %p63
        %p388 = pneg %p60
        %s389 = sand.u32 %s28, 1
        %s390 = scalar_lea.sflag [#allocation8], %s389
        %s391 = sand.u32 %s76, 1
        %s392 = smul.addr %s391, 8
        %s393 = scalar_lea.vmem [#allocation7], %s392
        %p394 = pneg %p89
        %p395 = pneg %p86
        %s396 = sand.u32 %s28, 1
        %s397 = scalar_lea.sflag [#allocation8], %s396
        %s398 = sand.u32 %s102, 1
        %s399 = scalar_lea.vmem [#allocation9], %s398
        %p400 = pneg %p115
        %p401 = pneg %p112
        %p402 = pneg %p136
        %p403 = pneg %p133
        %p404 = pneg %p157
        %p405 = pneg %p154
        %p406 = pneg %p178
        %p407 = pneg %p175
        %p408 = pneg %p199
        %p409 = pneg %p196
        %p410 = pneg %p227
        %p411 = pneg %p224
        %s412 = sand.u32 %s214, 1
        %s413 = scalar_lea.sflag [#allocation6], %s412
        %s414 = sand.u32 %s214, 1
        %s415 = smul.addr %s414, 8
        %s416 = scalar_lea.vmem [#allocation13], %s415
        %p417 = scmp.eq.s32.totalorder %s33, 0
        // Predicated region
        $region69: #{tpu_custom_call.1} parent=47 // pred_check
          %p418 = pneg %p417
        $region70: #{tpu_custom_call.1} parent=47 // pred_check_branch
          %420 = sbr.rel (%p418) target = $region72
        $region71: #{tpu_custom_call.1} parent=47 // pred_region
          %v421 = vld [vmem:[%s357] sm:$0xff]
          %v422 = vld [vmem:[#allocation12] sm:$0xff]
          %v423 = vld [vmem:[#allocation12 + $0x8] sm:$0xff]
          %v424 = vld [vmem:[#allocation12 + $0x10] sm:$0xff]
          %v425 = vld [vmem:[#allocation12 + $0x18] sm:$0xff]
          %v426 = vld [vmem:[%s6] sm:$0x1]
          %v428 = vperm.slane %v426, 0
          %vm430 = vcmask 261120
          %v432 = vsel %vm430, %v421, 0
          %434 = vmatpush.msra.mxu0 0.0
          %435 = vmatpush.msra.mxu0 0.0
          %436 = vmatpush.msra.mxu0 0.0
          %437 = vmatpush.msra.mxu0 0.0
          %438 = vmatpush.msra.mxu0 0.0
          %439 = vmatpush.msra.mxu0 0.0
          %440 = vmatpush.msra.mxu0 0.0
          %441 = vmatpush.msra.mxu0 0.0
          %442 = vmatpush.msra.mxu0 0.0
          %443 = vmatpush.msra.mxu0 0.0
          %444 = vmatpush.msra.mxu0 0.0
          %445 = vmatpush.msra.mxu0 0.0
          %446 = vmatpush.msra.mxu0 %v425
          %447 = vmatpush.msra.mxu0 %v424
          %448 = vmatpush.msra.mxu0 %v423
          %449 = vmatpush.msra.mxu0 %v422
          %450 = vmatmul.f32.gmra.mxu0 %v432
          %v451 = vpop.f32.mrf.mxu0
          %v452 = vadd.f32 %v428, %v451
          %453 = vdwg.mxu0
          %vm454 = vcmask 523264
          %455 = vst.msk [vmem:[#allocation2] sm:$0xff] %vm454, %v452
        $region72: #{tpu_custom_call.1} parent=47 // pred_fallthru
          _
        %v456 = vld [vmem:[%s347] sm:$0xff]
        %v457 = vld [vmem:[#allocation10] sm:$0xff]
        %v458 = vld [vmem:[#allocation10 + $0x8] sm:$0xff]
        %v459 = vld [vmem:[#allocation10 + $0x10] sm:$0xff]
        %v460 = vld [vmem:[#allocation10 + $0x18] sm:$0xff]
        %v461 = vld [vmem:[%s4] sm:$0x1]
        %v463 = vperm.slane %v461, 0
        %vm465 = vcmask 261120
        %v467 = vsel %vm465, %v456, 0
        %469 = vmatpush.msra.mxu0 0.0
        %470 = vmatpush.msra.mxu0 0.0
        %471 = vmatpush.msra.mxu0 0.0
        %472 = vmatpush.msra.mxu0 0.0
        %473 = vmatpush.msra.mxu0 0.0
        %474 = vmatpush.msra.mxu0 0.0
        %475 = vmatpush.msra.mxu0 0.0
        %476 = vmatpush.msra.mxu0 0.0
        %477 = vmatpush.msra.mxu0 0.0
        %478 = vmatpush.msra.mxu0 0.0
        %479 = vmatpush.msra.mxu0 0.0
        %480 = vmatpush.msra.mxu0 0.0
        %481 = vmatpush.msra.mxu0 %v460
        %482 = vmatpush.msra.mxu0 %v459
        %483 = vmatpush.msra.mxu0 %v458
        %484 = vmatpush.msra.mxu0 %v457
        %485 = vmatmul.f32.gmra.mxu0 %v467
        %v486 = vpop.f32.mrf.mxu0
        %v487 = vadd.f32 %v463, %v486
        %488 = vdwg.mxu0
        %v489 = vld [vmem:[#allocation2] sm:$0xff]
        %v490 = vld [vmem:[%s366] sm:$0x1]
        %v492 = vperm.slane %v490, 0
        %vm494 = vcmask 64512
        %v496 = vsel %vm494, %v487, 0
        %v499 = vsel %vm494, %v489, 0
        %501 = vmatpush.xpose.msra.mxu0 0.0
        %502 = vmatpush.xpose.msra.mxu0 0.0
        %503 = vmatpush.xpose.msra.mxu0 0.0
        %504 = vmatpush.xpose.msra.mxu0 0.0
        %505 = vmatpush.xpose.msra.mxu0 0.0
        %506 = vmatpush.xpose.msra.mxu0 0.0
        %507 = vmatpush.xpose.msra.mxu0 0.0
        %508 = vmatpush.xpose.msra.mxu0 0.0
        %509 = vmatpush.xpose.msra.mxu0 0.0
        %510 = vmatpush.xpose.msra.mxu0 0.0
        %511 = vmatpush.xpose.msra.mxu0 0.0
        %512 = vmatpush.xpose.msra.mxu0 0.0
        %513 = vmatpush.xpose.msra.mxu0 0.0
        %514 = vmatpush.xpose.msra.mxu0 0.0
        %515 = vmatpush.xpose.msra.mxu0 0.0
        %516 = vmatpush.xpose.msra.mxu0 %v499
        %517 = vmatmul.f32.gmra.mxu0 %v496
        %v518 = vpop.f32.mrf.mxu0
        %v519 = vadd.f32 %v492, %v518
        %520 = vdwg.mxu0
        %v521 = vsel %vm494, %v519, -inf
        %522 = vmax.xlane.f32.xlu0 %v521
        %v523 = vpop.xlane.xlu0 %522
        %v524 = vsub.f32 %v519, %v523
        %v525 = vmul.f32 %v524, 1.442695
        %v526 = vpow.pop %v525
        %v527 = vsel %vm494, %v526, 0.0
        %528 = vadd.xlane.f32.xlu0 %v527
        %v529 = vpop.xlane.xlu0 %528
        %v530 = vrcp.pop %v529
        %v531 = vmul.f32 %v526, %v530
        %532 = vrot.lane.b32.xlu0 %v489, 96
        %v533 = vpop.permute.xlu0 %532
        %v536 = vsel %vm494, %v531, 0
        %538 = vmatpush.msra.mxu0 0.0
        %539 = vmatpush.msra.mxu0 0.0
        %540 = vmatpush.msra.mxu0 0.0
        %541 = vmatpush.msra.mxu0 0.0
        %542 = vmatpush.msra.mxu0 0.0
        %543 = vmatpush.msra.mxu0 0.0
        %544 = vmatpush.msra.mxu0 0.0
        %545 = vmatpush.msra.mxu0 0.0
        %546 = vmatpush.msra.mxu0 0.0
        %547 = vmatpush.msra.mxu0 0.0
        %548 = vmatpush.msra.mxu0 0.0
        %549 = vmatpush.msra.mxu0 0.0
        %550 = vmatpush.msra.mxu0 0.0
        %551 = vmatpush.msra.mxu0 0.0
        %552 = vmatpush.msra.mxu0 0.0
        %553 = vmatpush.msra.mxu0 %v533
        %554 = vmatmul.f32.gmra.mxu0 %v536
        %v555 = vpop.f32.mrf.mxu0
        %v556 = vadd.f32 0.0, %v555
        %557 = vdwg.mxu0
        %558 = vrot.lane.b32.xlu0 %v487, 120
        %v559 = vpop.permute.xlu0 %558
        %560 = vrot.lane.b32.xlu0 %v489, 120
        %v561 = vpop.permute.xlu0 %560
        %v562 = vsel %vm494, %v559, 0
        %v564 = vsel %vm494, %v561, 0
        %566 = vmatpush.xpose.msra.mxu0 0.0
        %567 = vmatpush.xpose.msra.mxu0 0.0
        %568 = vmatpush.xpose.msra.mxu0 0.0
        %569 = vmatpush.xpose.msra.mxu0 0.0
        %570 = vmatpush.xpose.msra.mxu0 0.0
        %571 = vmatpush.xpose.msra.mxu0 0.0
        %572 = vmatpush.xpose.msra.mxu0 0.0
        %573 = vmatpush.xpose.msra.mxu0 0.0
        %574 = vmatpush.xpose.msra.mxu0 0.0
        %575 = vmatpush.xpose.msra.mxu0 0.0
        %576 = vmatpush.xpose.msra.mxu0 0.0
        %577 = vmatpush.xpose.msra.mxu0 0.0
        %578 = vmatpush.xpose.msra.mxu0 0.0
        %579 = vmatpush.xpose.msra.mxu0 0.0
        %580 = vmatpush.xpose.msra.mxu0 0.0
        %581 = vmatpush.xpose.msra.mxu0 %v564
        %582 = vmatmul.f32.gmra.mxu0 %v562
        %v583 = vpop.f32.mrf.mxu0
        %v584 = vadd.f32 %v492, %v583
        %585 = vdwg.mxu0
        %v586 = vsel %vm494, %v584, -inf
        %587 = vmax.xlane.f32.xlu0 %v586
        %v588 = vpop.xlane.xlu0 %587
        %v589 = vsub.f32 %v584, %v588
        %v590 = vmul.f32 %v589, 1.442695
        %v591 = vpow.pop %v590
        %v592 = vsel %vm494, %v591, 0.0
        %593 = vadd.xlane.f32.xlu0 %v592
        %v594 = vpop.xlane.xlu0 %593
        %v595 = vrcp.pop %v594
        %v596 = vmul.f32 %v591, %v595
        %597 = vrot.lane.b32.xlu0 %v489, 88
        %v598 = vpop.permute.xlu0 %597
        %v601 = vsel %vm494, %v596, 0
        %603 = vmatpush.msra.mxu0 0.0
        %604 = vmatpush.msra.mxu0 0.0
        %605 = vmatpush.msra.mxu0 0.0
        %606 = vmatpush.msra.mxu0 0.0
        %607 = vmatpush.msra.mxu0 0.0
        %608 = vmatpush.msra.mxu0 0.0
        %609 = vmatpush.msra.mxu0 0.0
        %610 = vmatpush.msra.mxu0 0.0
        %611 = vmatpush.msra.mxu0 0.0
        %612 = vmatpush.msra.mxu0 0.0
        %613 = vmatpush.msra.mxu0 0.0
        %614 = vmatpush.msra.mxu0 0.0
        %615 = vmatpush.msra.mxu0 0.0
        %616 = vmatpush.msra.mxu0 0.0
        %617 = vmatpush.msra.mxu0 0.0
        %618 = vmatpush.msra.mxu0 %v598
        %619 = vmatmul.f32.gmra.mxu0 %v601
        %v620 = vpop.f32.mrf.mxu0
        %v621 = vadd.f32 0.0, %v620
        %622 = vdwg.mxu0
        %624 = vrot.lane.b32.xlu0 %v621, 8
        %v625 = vpop.permute.xlu0 %624
        %v627 = vsel %vm494, %v556, %v625
        %vm628 = vcmask 130048
        %629 = vst.msk [vmem:[#allocation3] sm:$0xff] %vm628, %v627
        %630 = vrot.lane.b32.xlu0 %v487, 112
        %v631 = vpop.permute.xlu0 %630
        %632 = vrot.lane.b32.xlu0 %v489, 112
        %v633 = vpop.permute.xlu0 %632
        %v634 = vsel %vm494, %v631, 0
        %v636 = vsel %vm494, %v633, 0
        %638 = vmatpush.xpose.msra.mxu0 0.0
        %639 = vmatpush.xpose.msra.mxu0 0.0
        %640 = vmatpush.xpose.msra.mxu0 0.0
        %641 = vmatpush.xpose.msra.mxu0 0.0
        %642 = vmatpush.xpose.msra.mxu0 0.0
        %643 = vmatpush.xpose.msra.mxu0 0.0
        %644 = vmatpush.xpose.msra.mxu0 0.0
        %645 = vmatpush.xpose.msra.mxu0 0.0
        %646 = vmatpush.xpose.msra.mxu0 0.0
        %647 = vmatpush.xpose.msra.mxu0 0.0
        %648 = vmatpush.xpose.msra.mxu0 0.0
        %649 = vmatpush.xpose.msra.mxu0 0.0
        %650 = vmatpush.xpose.msra.mxu0 0.0
        %651 = vmatpush.xpose.msra.mxu0 0.0
        %652 = vmatpush.xpose.msra.mxu0 0.0
        %653 = vmatpush.xpose.msra.mxu0 %v636
        %654 = vmatmul.f32.gmra.mxu0 %v634
        %v655 = vpop.f32.mrf.mxu0
        %v656 = vadd.f32 %v492, %v655
        %657 = vdwg.mxu0
        %v658 = vsel %vm494, %v656, -inf
        %659 = vmax.xlane.f32.xlu0 %v658
        %v660 = vpop.xlane.xlu0 %659
        %v661 = vsub.f32 %v656, %v660
        %v662 = vmul.f32 %v661, 1.442695
        %v663 = vpow.pop %v662
        %v664 = vsel %vm494, %v663, 0.0
        %665 = vadd.xlane.f32.xlu0 %v664
        %v666 = vpop.xlane.xlu0 %665
        %v667 = vrcp.pop %v666
        %v668 = vmul.f32 %v663, %v667
        %669 = vrot.lane.b32.xlu0 %v489, 80
        %v670 = vpop.permute.xlu0 %669
        %v673 = vsel %vm494, %v668, 0
        %675 = vmatpush.msra.mxu0 0.0
        %676 = vmatpush.msra.mxu0 0.0
        %677 = vmatpush.msra.mxu0 0.0
        %678 = vmatpush.msra.mxu0 0.0
        %679 = vmatpush.msra.mxu0 0.0
        %680 = vmatpush.msra.mxu0 0.0
        %681 = vmatpush.msra.mxu0 0.0
        %682 = vmatpush.msra.mxu0 0.0
        %683 = vmatpush.msra.mxu0 0.0
        %684 = vmatpush.msra.mxu0 0.0
        %685 = vmatpush.msra.mxu0 0.0
        %686 = vmatpush.msra.mxu0 0.0
        %687 = vmatpush.msra.mxu0 0.0
        %688 = vmatpush.msra.mxu0 0.0
        %689 = vmatpush.msra.mxu0 0.0
        %690 = vmatpush.msra.mxu0 %v670
        %691 = vmatmul.f32.gmra.mxu0 %v673
        %v692 = vpop.f32.mrf.mxu0
        %v693 = vadd.f32 0.0, %v692
        %694 = vdwg.mxu0
        %695 = vrot.lane.b32.xlu0 %v487, 104
        %v696 = vpop.permute.xlu0 %695
        %697 = vrot.lane.b32.xlu0 %v489, 104
        %v698 = vpop.permute.xlu0 %697
        %v699 = vsel %vm494, %v696, 0
        %v701 = vsel %vm494, %v698, 0
        %703 = vmatpush.xpose.msra.mxu0 0.0
        %704 = vmatpush.xpose.msra.mxu0 0.0
        %705 = vmatpush.xpose.msra.mxu0 0.0
        %706 = vmatpush.xpose.msra.mxu0 0.0
        %707 = vmatpush.xpose.msra.mxu0 0.0
        %708 = vmatpush.xpose.msra.mxu0 0.0
        %709 = vmatpush.xpose.msra.mxu0 0.0
        %710 = vmatpush.xpose.msra.mxu0 0.0
        %711 = vmatpush.xpose.msra.mxu0 0.0
        %712 = vmatpush.xpose.msra.mxu0 0.0
        %713 = vmatpush.xpose.msra.mxu0 0.0
        %714 = vmatpush.xpose.msra.mxu0 0.0
        %715 = vmatpush.xpose.msra.mxu0 0.0
        %716 = vmatpush.xpose.msra.mxu0 0.0
        %717 = vmatpush.xpose.msra.mxu0 0.0
        %718 = vmatpush.xpose.msra.mxu0 %v701
        %719 = vmatmul.f32.gmra.mxu0 %v699
        %v720 = vpop.f32.mrf.mxu0
        %v721 = vadd.f32 %v492, %v720
        %722 = vdwg.mxu0
        %v723 = vsel %vm494, %v721, -inf
        %724 = vmax.xlane.f32.xlu0 %v723
        %v725 = vpop.xlane.xlu0 %724
        %v726 = vsub.f32 %v721, %v725
        %v727 = vmul.f32 %v726, 1.442695
        %v728 = vpow.pop %v727
        %v729 = vsel %vm494, %v728, 0.0
        %730 = vadd.xlane.f32.xlu0 %v729
        %v731 = vpop.xlane.xlu0 %730
        %v732 = vrcp.pop %v731
        %v733 = vmul.f32 %v728, %v732
        %734 = vrot.lane.b32.xlu0 %v489, 72
        %v735 = vpop.permute.xlu0 %734
        %v738 = vsel %vm494, %v733, 0
        %740 = vmatpush.msra.mxu0 0.0
        %741 = vmatpush.msra.mxu0 0.0
        %742 = vmatpush.msra.mxu0 0.0
        %743 = vmatpush.msra.mxu0 0.0
        %744 = vmatpush.msra.mxu0 0.0
        %745 = vmatpush.msra.mxu0 0.0
        %746 = vmatpush.msra.mxu0 0.0
        %747 = vmatpush.msra.mxu0 0.0
        %748 = vmatpush.msra.mxu0 0.0
        %749 = vmatpush.msra.mxu0 0.0
        %750 = vmatpush.msra.mxu0 0.0
        %751 = vmatpush.msra.mxu0 0.0
        %752 = vmatpush.msra.mxu0 0.0
        %753 = vmatpush.msra.mxu0 0.0
        %754 = vmatpush.msra.mxu0 0.0
        %755 = vmatpush.msra.mxu0 %v735
        %756 = vmatmul.f32.gmra.mxu0 %v738
        %v757 = vpop.f32.mrf.mxu0
        %v758 = vadd.f32 0.0, %v757
        %759 = vdwg.mxu0
        %761 = vrot.lane.b32.xlu0 %v758, 8
        %v762 = vpop.permute.xlu0 %761
        %v764 = vsel %vm494, %v693, %v762
        %766 = vrot.lane.b32.xlu0 %v764, 16
        %v767 = vpop.permute.xlu0 %766
        %vm769 = vcmask 261248
        %770 = vst.msk [vmem:[#allocation3] sm:$0xff] %vm769, %v767
        %v771 = vld [vmem:[#allocation3] sm:$0xff]
        %772 = vst.msk [vmem:[%s416] sm:$0xff] %vm465, %v771
        %s773 = sand.u32 %s214, 1
        %s774 = scalar_lea.sflag [#allocation6], %s773
        %s775 = sand.u32 %s214, 1
        %s776 = smul.addr %s775, 8
        %s777 = scalar_lea.vmem [#allocation13], %s776
        // Predicated region
        $region73: #{tpu_custom_call.1} parent=47 // pred_check
          %p778 = pneg %p224
        $region74: #{tpu_custom_call.1} parent=47 // pred_check_branch
          %780 = sbr.rel (%p778) target = $region76
        $region75: #{tpu_custom_call.1} parent=47 // pred_region
          %782 = vsyncadd %s774, 0
          %s783 = sadd.s32 %s33, %s32
          %s784 = smul.addr %s783, 8
          %s785 = scalar_lea.hbm %s7, %s784
          %s787 = sshll.u32 %s777, 4
          %s788 = int_to_ptr.vmem [resolvable:$true] %s787
          %s789 = sshll.u32 %s785, 4
          %s790 = int_to_ptr.hbm [resolvable:$true] %s789
          %792 = dma.vmem_to_hbm [thread:$0]  %s788, 128, %s790, %s774
        $region76: #{tpu_custom_call.1} parent=47 // pred_fallthru
          _
      $region48: #{tpu_custom_call.1} parent=5 // pred_fallthru
        _
      %p793 = scmp.le.s32.totalorder 2, %s23
      // Predicated region
      $region77: #{tpu_custom_call.1} parent=5 // pred_check
        %p794 = pneg %p793
      $region78: #{tpu_custom_call.1} parent=5 // pred_check_branch
        %796 = sbr.rel (%p794) target = $region80
      $region79: #{tpu_custom_call.1} parent=5 // pred_region
        %s797 = ssub.s32 %s23, 2
        // Predicated region
        $region81: #{tpu_custom_call.1} parent=79 // pred_check
          %p798 = pneg %p230
        $region82: #{tpu_custom_call.1} parent=79 // pred_check_branch
          %800 = sbr.rel (%p798) target = $region84
        $region83: #{tpu_custom_call.1} parent=79 // pred_region
          %s801 = sand.u32 %s215, 1
          %s802 = scalar_lea.sflag [#allocation6], %s801
          %s803 = sand.u32 %s215, 1
          %s804 = smul.addr %s803, 8
          %s805 = scalar_lea.vmem [#allocation13], %s804
          %807 = dma.done %s802, 128
        $region84: #{tpu_custom_call.1} parent=79 // pred_fallthru
          _
      $region80: #{tpu_custom_call.1} parent=5 // pred_fallthru
        _
    $region6: #{tpu_custom_call.1} parent=1 // loop_footer
      %s27 = sadd.s32 1, %s23
    $region7: #{tpu_custom_call.1} parent=1 // loop_footer_branch
      %22 = sbr.rel target = $region3
    $region8: #{tpu_custom_call.1} parent=1 // loop_exit
      _
    %808 = vsyncpa [#allocation5], 1
    %s809 = scalar_lea.sflag [#allocation5], 1
    %810 = vsyncpa %s809, 1
    %811 = vsyncpa [#allocation8], 1
    %s812 = scalar_lea.sflag [#allocation8], 1
    %813 = vsyncpa %s812, 1
    %814 = vsyncpa [#allocation11], 1
    %815 = vsyncpa [#allocation6], 1
    %s816 = scalar_lea.sflag [#allocation6], 1
    %817 = vsyncpa %s816, 1

// kernel: tpu_custom_call.1
$region0: #{tpu_custom_call.1}
  #allocation0 [shape = 'u32[]', space=smem, size = 0x4, offset = 0x4, fixed_abs, tag = 'smem constant byte address 0x4 - core index']
  #allocation1 [shape = 'u32[72,128]{1,0:T(1,128)}', space=vmem, size = 0x9000, scoped, tag = 'internal scratch']
  #allocation2 [shape = 'f32[8,64]{1,0:T(8,128)}', space=vmem, size = 0x1000, scoped, tag = 'scratch operand']
  #allocation3 [shape = 'f32[8,32]{1,0:T(8,128)}', space=vmem, size = 0x1000, scoped, tag = 'scratch operand']
  %s0 = inlined_call_operand.hbm [shape: f32[2,8,32], index: 0, kind: input, shape index: {}]
  %s1 = inlined_call_operand.hbm [shape: f32[2,8,32], index: 1, kind: input, shape index: {}]
  %s2 = inlined_call_operand.hbm [shape: f32[2,1,8], index: 2, kind: input, shape index: {}]
  %s3 = inlined_call_operand.hbm [shape: f32[32,32], index: 3, kind: input, shape index: {}]
  %s4 = inlined_call_operand.vmem [shape: f32[1,32], index: 4, kind: input, shape index: {}]
  %s5 = inlined_call_operand.hbm [shape: f32[32,64], index: 5, kind: input, shape index: {}]
  %s6 = inlined_call_operand.vmem [shape: f32[1,64], index: 6, kind: input, shape index: {}]
  %s7 = inlined_call_operand.hbm [shape: f32[2,8,32], index: 7, kind: output, shape index: {}]
  %s8 = sld [smem:[#allocation0]]
  $region85: #{tpu_custom_call.1} parent=0
    _
  %s10 = ssub.s32 1, %s8
  %s11 = scalar_select 0, %s10, %s8
  $region1: #{tpu_custom_call.1} parent=0
    #allocation4 [shape = 'u8[8192]{0}', space=vmem, size = 0x2000, scoped, tag = 'input window, operand 0']
    #allocation5 [shape = 's32[2]{0}', space=sflag, size = 0x8, scoped, tag = 'scoped memory for tpu_custom_call.1']
    #allocation6 [shape = 's32[2]{0}', space=sflag, size = 0x8, scoped, tag = 'scoped memory for tpu_custom_call.1']
    #allocation7 [shape = 'u8[8192]{0}', space=vmem, size = 0x2000, scoped, tag = 'input window, operand 1']
    #allocation8 [shape = 's32[2]{0}', space=sflag, size = 0x8, scoped, tag = 'scoped memory for tpu_custom_call.1']
    #allocation9 [shape = 'u8[1024]{0}', space=vmem, size = 0x400, scoped, tag = 'input window, operand 2']
    #allocation10 [shape = 'u8[16384]{0}', space=vmem, size = 0x4000, scoped, tag = 'input window, operand 3, single buffered']
    #allocation11 [shape = 's32[1]{0}', space=sflag, size = 0x4, scoped, tag = 'scoped memory for tpu_custom_call.1']
    #allocation12 [shape = 'u8[16384]{0}', space=vmem, size = 0x4000, scoped, tag = 'input window, operand 5, single buffered']
    #allocation13 [shape = 'u8[8192]{0}', space=vmem, size = 0x2000, scoped, tag = 'output window, operand 0']
    %12 = vsyncpa [#allocation5], 0
    %s13 = scalar_lea.sflag [#allocation5], 1
    %14 = vsyncpa %s13, 0
    %15 = vsyncpa [#allocation8], 0
    %s16 = scalar_lea.sflag [#allocation8], 1
    %17 = vsyncpa %s16, 0
    %18 = vsyncpa [#allocation11], 0
    %19 = vsyncpa [#allocation6], 0
    %s20 = scalar_lea.sflag [#allocation6], 1
    %21 = vsyncpa %s20, 0
    loop: start=0, step=1, limit=4
    $region2: #{tpu_custom_call.1} parent=1 // loop_pre_header
      _
    $region3: #{tpu_custom_call.1} parent=1 // loop_header
      %s23 = sphi 0, %s27
      %p24 = scmp.ge.s32.totalorder %s23, 4
      %s30 = sphi 0, %s42
      %s31 = sphi 0, %s38
      %s32 = sphi 0, %s30
      %s33 = sphi 0, %s31
      %s34 = sphi 0, %s32
      %s35 = sphi 0, %s33
      %s47 = sphi 0, %s49
      %s50 = sphi 0, %s47
      %s51 = sphi 0, %s50
      %s67 = sphi 0, %s51
      %s73 = sphi 0, %s75
      %s76 = sphi 0, %s73
      %s77 = sphi 0, %s76
      %s93 = sphi 0, %s77
      %s99 = sphi 0, %s101
      %s102 = sphi 0, %s99
      %s103 = sphi 0, %s102
      %s119 = sphi 0, %s103
      %s123 = sphi 0, %s123
      %s125 = sphi 0, %s123
      %s126 = sphi 0, %s125
      %s140 = sphi 0, %s126
      %s144 = sphi 0, %s144
      %s146 = sphi 0, %s144
      %s147 = sphi 0, %s146
      %s161 = sphi 0, %s147
      %s165 = sphi 0, %s165
      %s167 = sphi 0, %s165
      %s168 = sphi 0, %s167
      %s182 = sphi 0, %s168
      %s186 = sphi 0, %s186
      %s188 = sphi 0, %s186
      %s189 = sphi 0, %s188
      %s203 = sphi 0, %s189
      %s211 = sphi 0, %s213
      %s214 = sphi 0, %s211
      %s215 = sphi 0, %s214
      %s231 = sphi 0, %s215
    $region4: #{tpu_custom_call.1} parent=1 // loop_header_branch
      %26 = sbr.rel (%p24) target = $region8
    $region5: #{tpu_custom_call.1} parent=1 // loop_body
      %s28 = ssub.s32 %s23, 1
      %s29 = ssub.s32 %s23, 2
      %s36 = sadd.s32 1, %s31
      %p37 = scmp.ge.s32.totalorder %s36, 1
      %s38 = scalar_select %p37, 0, %s36
      %s39 = sadd.s32 1, %s30
      %s40 = scalar_select %p37, %s39, %s30
      %p41 = scmp.ge.s32.totalorder %s40, 2
      %s42 = scalar_select %p41, 0, %s40
      %s43 = ssub.s32 %s30, %s42
      %s44 = ssub.s32 %s31, %s38
      %s45 = sor.u32 %s43, %s44
      %p46 = scmp.eq.s32.totalorder %s45, 0
      %s48 = sadd.s32 %s47, 1
      %s49 = scalar_select %p46, %s47, %s48
      %p52 = pneg %p46
      %p53 = scmp.eq.s32.totalorder %s23, 1
      %p54 = por %p52, %p53
      %p55 = scmp.ne.s32.totalorder %s47, %s50
      %p56 = scmp.eq.s32.totalorder %s23, 0
      %p57 = por %p55, %p56
      %p58 = scmp.ne.s32.totalorder %s47, %s50
      %p59 = scmp.eq.s32.totalorder %s28, 1
      %p60 = por %p58, %p59
      %p61 = scmp.ne.s32.totalorder %s50, %s51
      %p62 = scmp.eq.s32.totalorder %s28, 0
      %p63 = por %p61, %p62
      %p64 = scmp.ne.s32.totalorder %s50, %s51
      %p65 = scmp.eq.s32.totalorder %s29, 1
      %p66 = por %p64, %p65
      %p68 = scmp.ne.s32.totalorder %s51, %s67
      %p69 = scmp.eq.s32.totalorder %s29, 0
      %p70 = por %p68, %p69
      %s71 = ssub.s32 %s30, %s42
      %p72 = scmp.eq.s32.totalorder %s71, 0
      %s74 = sadd.s32 %s73, 1
      %s75 = scalar_select %p72, %s73, %s74
      %p78 = pneg %p72
      %p79 = scmp.eq.s32.totalorder %s23, 1
      %p80 = por %p78, %p79
      %p81 = scmp.ne.s32.totalorder %s73, %s76
      %p82 = scmp.eq.s32.totalorder %s23, 0
      %p83 = por %p81, %p82
      %p84 = scmp.ne.s32.totalorder %s73, %s76
      %p85 = scmp.eq.s32.totalorder %s28, 1
      %p86 = por %p84, %p85
      %p87 = scmp.ne.s32.totalorder %s76, %s77
      %p88 = scmp.eq.s32.totalorder %s28, 0
      %p89 = por %p87, %p88
      %p90 = scmp.ne.s32.totalorder %s76, %s77
      %p91 = scmp.eq.s32.totalorder %s29, 1
      %p92 = por %p90, %p91
      %p94 = scmp.ne.s32.totalorder %s77, %s93
      %p95 = scmp.eq.s32.totalorder %s29, 0
      %p96 = por %p94, %p95
      %s97 = ssub.s32 %s30, %s42
      %p98 = scmp.eq.s32.totalorder %s97, 0
      %s100 = sadd.s32 %s99, 1
      %s101 = scalar_select %p98, %s99, %s100
      %p104 = pneg %p98
      %p105 = scmp.eq.s32.totalorder %s23, 1
      %p106 = por %p104, %p105
      %p107 = scmp.ne.s32.totalorder %s99, %s102
      %p108 = scmp.eq.s32.totalorder %s23, 0
      %p109 = por %p107, %p108
      %p110 = scmp.ne.s32.totalorder %s99, %s102
      %p111 = scmp.eq.s32.totalorder %s28, 1
      %p112 = por %p110, %p111
      %p113 = scmp.ne.s32.totalorder %s102, %s103
      %p114 = scmp.eq.s32.totalorder %s28, 0
      %p115 = por %p113, %p114
      %p116 = scmp.ne.s32.totalorder %s102, %s103
      %p117 = scmp.eq.s32.totalorder %s29, 1
      %p118 = por %p116, %p117
      %p120 = scmp.ne.s32.totalorder %s103, %s119
      %p121 = scmp.eq.s32.totalorder %s29, 0
      %p122 = por %p120, %p121
      %s124 = sadd.s32 %s123, 1
      %p127 = scmp.eq.s32.totalorder %s23, 1
      %p128 = scmp.ne.s32.totalorder %s123, %s125
      %p129 = scmp.eq.s32.totalorder %s23, 0
      %p130 = por %p128, %p129
      %p131 = scmp.ne.s32.totalorder %s123, %s125
      %p132 = scmp.eq.s32.totalorder %s28, 1
      %p133 = por %p131, %p132
      %p134 = scmp.ne.s32.totalorder %s125, %s126
      %p135 = scmp.eq.s32.totalorder %s28, 0
      %p136 = por %p134, %p135
      %p137 = scmp.ne.s32.totalorder %s125, %s126
      %p138 = scmp.eq.s32.totalorder %s29, 1
      %p139 = por %p137, %p138
      %p141 = scmp.ne.s32.totalorder %s126, %s140
      %p142 = scmp.eq.s32.totalorder %s29, 0
      %p143 = por %p141, %p142
      %s145 = sadd.s32 %s144, 1
      %p148 = scmp.eq.s32.totalorder %s23, 1
      %p149 = scmp.ne.s32.totalorder %s144, %s146
      %p150 = scmp.eq.s32.totalorder %s23, 0
      %p151 = por %p149, %p150
      %p152 = scmp.ne.s32.totalorder %s144, %s146
      %p153 = scmp.eq.s32.totalorder %s28, 1
      %p154 = por %p152, %p153
      %p155 = scmp.ne.s32.totalorder %s146, %s147
      %p156 = scmp.eq.s32.totalorder %s28, 0
      %p157 = por %p155, %p156
      %p158 = scmp.ne.s32.totalorder %s146, %s147
      %p159 = scmp.eq.s32.totalorder %s29, 1
      %p160 = por %p158, %p159
      %p162 = scmp.ne.s32.totalorder %s147, %s161
      %p163 = scmp.eq.s32.totalorder %s29, 0
      %p164 = por %p162, %p163
      %s166 = sadd.s32 %s165, 1
      %p169 = scmp.eq.s32.totalorder %s23, 1
      %p170 = scmp.ne.s32.totalorder %s165, %s167
      %p171 = scmp.eq.s32.totalorder %s23, 0
      %p172 = por %p170, %p171
      %p173 = scmp.ne.s32.totalorder %s165, %s167
      %p174 = scmp.eq.s32.totalorder %s28, 1
      %p175 = por %p173, %p174
      %p176 = scmp.ne.s32.totalorder %s167, %s168
      %p177 = scmp.eq.s32.totalorder %s28, 0
      %p178 = por %p176, %p177
      %p179 = scmp.ne.s32.totalorder %s167, %s168
      %p180 = scmp.eq.s32.totalorder %s29, 1
      %p181 = por %p179, %p180
      %p183 = scmp.ne.s32.totalorder %s168, %s182
      %p184 = scmp.eq.s32.totalorder %s29, 0
      %p185 = por %p183, %p184
      %s187 = sadd.s32 %s186, 1
      %p190 = scmp.eq.s32.totalorder %s23, 1
      %p191 = scmp.ne.s32.totalorder %s186, %s188
      %p192 = scmp.eq.s32.totalorder %s23, 0
      %p193 = por %p191, %p192
      %p194 = scmp.ne.s32.totalorder %s186, %s188
      %p195 = scmp.eq.s32.totalorder %s28, 1
      %p196 = por %p194, %p195
      %p197 = scmp.ne.s32.totalorder %s188, %s189
      %p198 = scmp.eq.s32.totalorder %s28, 0
      %p199 = por %p197, %p198
      %p200 = scmp.ne.s32.totalorder %s188, %s189
      %p201 = scmp.eq.s32.totalorder %s29, 1
      %p202 = por %p200, %p201
      %p204 = scmp.ne.s32.totalorder %s189, %s203
      %p205 = scmp.eq.s32.totalorder %s29, 0
      %p206 = por %p204, %p205
      %s207 = ssub.s32 %s30, %s42
      %s208 = ssub.s32 %s31, %s38
      %s209 = sor.u32 %s207, %s208
      %p210 = scmp.eq.s32.totalorder %s209, 0
      %s212 = sadd.s32 %s211, 1
      %s213 = scalar_select %p210, %s211, %s212
      %p216 = pneg %p210
      %p217 = scmp.eq.s32.totalorder %s23, 1
      %p218 = por %p216, %p217
      %p219 = scmp.ne.s32.totalorder %s211, %s214
      %p220 = scmp.eq.s32.totalorder %s23, 0
      %p221 = por %p219, %p220
      %p222 = scmp.ne.s32.totalorder %s211, %s214
      %p223 = scmp.eq.s32.totalorder %s28, 1
      %p224 = por %p222, %p223
      %p225 = scmp.ne.s32.totalorder %s214, %s215
      %p226 = scmp.eq.s32.totalorder %s28, 0
      %p227 = por %p225, %p226
      %p228 = scmp.ne.s32.totalorder %s214, %s215
      %p229 = scmp.eq.s32.totalorder %s29, 1
      %p230 = por %p228, %p229
      %p232 = scmp.ne.s32.totalorder %s215, %s231
      %p233 = scmp.eq.s32.totalorder %s29, 0
      %p234 = por %p232, %p233
      %p235 = scmp.le.s32.totalorder 1, %s23
      %p236 = scmp.lt.s32.totalorder %s23, 3
      %p237 = pnand %p235, %p236
      %p238 = pneg %p237
      // Predicated region
      $region9: #{tpu_custom_call.1} parent=5 // pred_check
        _
      $region10: #{tpu_custom_call.1} parent=5 // pred_check_branch
        %240 = sbr.rel (%p237) target = $region12
      $region11: #{tpu_custom_call.1} parent=5 // pred_region
        %s241 = ssub.s32 %s23, 1
        // Predicated region
        $region13: #{tpu_custom_call.1} parent=11 // pred_check
          %p242 = pneg %p136
        $region14: #{tpu_custom_call.1} parent=11 // pred_check_branch
          %244 = sbr.rel (%p242) target = $region16
        $region15: #{tpu_custom_call.1} parent=11 // pred_region
          %246 = vsyncadd [#allocation11], 0
          %s247 = sshll.u32 %s3, 4
          %s248 = int_to_ptr.hbm [resolvable:$true] %s247
          %s249 = sshll.u32 [#allocation10], 4
          %s250 = int_to_ptr.vmem [resolvable:$true] %s249
          %255 = dma.hbm_to_vmem [thread:$0]  %s248, 512, %s250, [#allocation11], 128, 128, 8
        $region16: #{tpu_custom_call.1} parent=11 // pred_fallthru
          _
        // Predicated region
        $region17: #{tpu_custom_call.1} parent=11 // pred_check
          %p256 = pneg %p157
        $region18: #{tpu_custom_call.1} parent=11 // pred_check_branch
          %258 = sbr.rel (%p256) target = $region20
        $region19: #{tpu_custom_call.1} parent=11 // pred_region
          _
        $region20: #{tpu_custom_call.1} parent=11 // pred_fallthru
          _
        // Predicated region
        $region21: #{tpu_custom_call.1} parent=11 // pred_check
          %p259 = pneg %p178
        $region22: #{tpu_custom_call.1} parent=11 // pred_check_branch
          %261 = sbr.rel (%p259) target = $region24
        $region23: #{tpu_custom_call.1} parent=11 // pred_region
          %263 = vsyncadd [#allocation11], 0
          %s264 = sshll.u32 %s5, 4
          %s265 = int_to_ptr.hbm [resolvable:$true] %s264
          %s266 = sshll.u32 [#allocation12], 4
          %s267 = int_to_ptr.vmem [resolvable:$true] %s266
          %272 = dma.hbm_to_vmem [thread:$0]  %s265, 512, %s267, [#allocation11], 128, 128, 8
        $region24: #{tpu_custom_call.1} parent=11 // pred_fallthru
          _
        // Predicated region
        $region25: #{tpu_custom_call.1} parent=11 // pred_check
          %p273 = pneg %p199
        $region26: #{tpu_custom_call.1} parent=11 // pred_check_branch
          %275 = sbr.rel (%p273) target = $region28
        $region27: #{tpu_custom_call.1} parent=11 // pred_region
          _
        $region28: #{tpu_custom_call.1} parent=11 // pred_fallthru
          _
      $region12: #{tpu_custom_call.1} parent=5 // pred_fallthru
        _
      %p276 = scmp.lt.s32.totalorder %s23, 2
      // Predicated region
      $region29: #{tpu_custom_call.1} parent=5 // pred_check
        %p277 = pneg %p276
      $region30: #{tpu_custom_call.1} parent=5 // pred_check_branch
        %279 = sbr.rel (%p277) target = $region32
      $region31: #{tpu_custom_call.1} parent=5 // pred_region
        // Predicated region
        $region33: #{tpu_custom_call.1} parent=31 // pred_check
          %p280 = pneg %p57
        $region34: #{tpu_custom_call.1} parent=31 // pred_check_branch
          %282 = sbr.rel (%p280) target = $region36
        $region35: #{tpu_custom_call.1} parent=31 // pred_region
          %s283 = sand.u32 %s47, 1
          %s284 = scalar_lea.sflag [#allocation5], %s283
          %s285 = sand.u32 %s47, 1
          %s286 = smul.addr %s285, 8
          %s287 = scalar_lea.vmem [#allocation4], %s286
          %289 = vsyncadd %s284, 0
          %s290 = sadd.s32 %s31, %s30
          %s291 = smul.addr %s290, 8
          %s292 = scalar_lea.hbm %s0, %s291
          %s294 = sshll.u32 %s292, 4
          %s295 = int_to_ptr.hbm [resolvable:$true] %s294
          %s296 = sshll.u32 %s287, 4
          %s297 = int_to_ptr.vmem [resolvable:$true] %s296
          %299 = dma.hbm_to_vmem [thread:$0]  %s295, 128, %s297, %s284
        $region36: #{tpu_custom_call.1} parent=31 // pred_fallthru
          _
        // Predicated region
        $region37: #{tpu_custom_call.1} parent=31 // pred_check
          %p300 = pneg %p83
        $region38: #{tpu_custom_call.1} parent=31 // pred_check_branch
          %302 = sbr.rel (%p300) target = $region40
        $region39: #{tpu_custom_call.1} parent=31 // pred_region
          %s303 = sand.u32 %s23, 1
          %s304 = scalar_lea.sflag [#allocation8], %s303
          %s305 = sand.u32 %s73, 1
          %s306 = smul.addr %s305, 8
          %s307 = scalar_lea.vmem [#allocation7], %s306
          %309 = vsyncadd %s304, 0
          %s310 = smul.addr %s30, 8
          %s311 = scalar_lea.hbm %s1, %s310
          %s313 = sshll.u32 %s311, 4
          %s314 = int_to_ptr.hbm [resolvable:$true] %s313
          %s315 = sshll.u32 %s307, 4
          %s316 = int_to_ptr.vmem [resolvable:$true] %s315
          %318 = dma.hbm_to_vmem [thread:$0]  %s314, 128, %s316, %s304
        $region40: #{tpu_custom_call.1} parent=31 // pred_fallthru
          _
        // Predicated region
        $region41: #{tpu_custom_call.1} parent=31 // pred_check
          %p319 = pneg %p109
        $region42: #{tpu_custom_call.1} parent=31 // pred_check_branch
          %321 = sbr.rel (%p319) target = $region44
        $region43: #{tpu_custom_call.1} parent=31 // pred_region
          %s322 = sand.u32 %s23, 1
          %s323 = scalar_lea.sflag [#allocation8], %s322
          %s324 = sand.u32 %s99, 1
          %s325 = scalar_lea.vmem [#allocation9], %s324
          %327 = vsyncadd %s323, 0
          %s328 = scalar_lea.hbm %s2, %s30
          %s330 = sshll.u32 %s328, 4
          %s331 = int_to_ptr.hbm [resolvable:$true] %s330
          %s332 = sshll.u32 %s325, 4
          %s333 = int_to_ptr.vmem [resolvable:$true] %s332
          %335 = dma.hbm_to_vmem [thread:$0]  %s331, 16, %s333, %s323
        $region44: #{tpu_custom_call.1} parent=31 // pred_fallthru
          _
      $region32: #{tpu_custom_call.1} parent=5 // pred_fallthru
        _
      %p336 = scmp.le.s32.totalorder 1, %s23
      %p337 = scmp.lt.s32.totalorder %s23, 3
      %p338 = pnand %p336, %p337
      %p339 = pneg %p338
      // Predicated region
      $region45: #{tpu_custom_call.1} parent=5 // pred_check
        _
      $region46: #{tpu_custom_call.1} parent=5 // pred_check_branch
        %341 = sbr.rel (%p338) target = $region48
      $region47: #{tpu_custom_call.1} parent=5 // pred_region
        %s342 = ssub.s32 %s23, 1
        %s343 = sand.u32 %s50, 1
        %s344 = scalar_lea.sflag [#allocation5], %s343
        %s345 = sand.u32 %s50, 1
        %s346 = smul.addr %s345, 8
        %s347 = scalar_lea.vmem [#allocation4], %s346
        // Predicated region
        $region49: #{tpu_custom_call.1} parent=47 // pred_check
          %p348 = pneg %p63
        $region50: #{tpu_custom_call.1} parent=47 // pred_check_branch
          %350 = sbr.rel (%p348) target = $region52
        $region51: #{tpu_custom_call.1} parent=47 // pred_region
          %352 = dma.done %s344, 128
        $region52: #{tpu_custom_call.1} parent=47 // pred_fallthru
          _
        %s353 = sand.u32 %s28, 1
        %s354 = scalar_lea.sflag [#allocation8], %s353
        %s355 = sand.u32 %s76, 1
        %s356 = smul.addr %s355, 8
        %s357 = scalar_lea.vmem [#allocation7], %s356
        // Predicated region
        $region53: #{tpu_custom_call.1} parent=47 // pred_check
          %p358 = pneg %p89
        $region54: #{tpu_custom_call.1} parent=47 // pred_check_branch
          %360 = sbr.rel (%p358) target = $region56
        $region55: #{tpu_custom_call.1} parent=47 // pred_region
          %362 = dma.done %s354, 128
        $region56: #{tpu_custom_call.1} parent=47 // pred_fallthru
          _
        %s363 = sand.u32 %s28, 1
        %s364 = scalar_lea.sflag [#allocation8], %s363
        %s365 = sand.u32 %s102, 1
        %s366 = scalar_lea.vmem [#allocation9], %s365
        // Predicated region
        $region57: #{tpu_custom_call.1} parent=47 // pred_check
          %p367 = pneg %p115
        $region58: #{tpu_custom_call.1} parent=47 // pred_check_branch
          %369 = sbr.rel (%p367) target = $region60
        $region59: #{tpu_custom_call.1} parent=47 // pred_region
          %371 = dma.done %s364, 16
        $region60: #{tpu_custom_call.1} parent=47 // pred_fallthru
          _
        // Predicated region
        $region61: #{tpu_custom_call.1} parent=47 // pred_check
          %p372 = pneg %p136
        $region62: #{tpu_custom_call.1} parent=47 // pred_check_branch
          %374 = sbr.rel (%p372) target = $region64
        $region63: #{tpu_custom_call.1} parent=47 // pred_region
          %376 = dma.done [#allocation11], 512
        $region64: #{tpu_custom_call.1} parent=47 // pred_fallthru
          _
        // Predicated region
        $region65: #{tpu_custom_call.1} parent=47 // pred_check
          %p377 = pneg %p178
        $region66: #{tpu_custom_call.1} parent=47 // pred_check_branch
          %379 = sbr.rel (%p377) target = $region68
        $region67: #{tpu_custom_call.1} parent=47 // pred_region
          %381 = dma.done [#allocation11], 512
        $region68: #{tpu_custom_call.1} parent=47 // pred_fallthru
          _
        %s382 = sand.u32 %s50, 1
        %s383 = scalar_lea.sflag [#allocation5], %s382
        %s384 = sand.u32 %s50, 1
        %s385 = smul.addr %s384, 8
        %s386 = scalar_lea.vmem [#allocation4], %s385
        %p387 = pneg %p63
        %p388 = pneg %p60
        %s389 = sand.u32 %s28, 1
        %s390 = scalar_lea.sflag [#allocation8], %s389
        %s391 = sand.u32 %s76, 1
        %s392 = smul.addr %s391, 8
        %s393 = scalar_lea.vmem [#allocation7], %s392
        %p394 = pneg %p89
        %p395 = pneg %p86
        %s396 = sand.u32 %s28, 1
        %s397 = scalar_lea.sflag [#allocation8], %s396
        %s398 = sand.u32 %s102, 1
        %s399 = scalar_lea.vmem [#allocation9], %s398
        %p400 = pneg %p115
        %p401 = pneg %p112
        %p402 = pneg %p136
        %p403 = pneg %p133
        %p404 = pneg %p157
        %p405 = pneg %p154
        %p406 = pneg %p178
        %p407 = pneg %p175
        %p408 = pneg %p199
        %p409 = pneg %p196
        %p410 = pneg %p227
        %p411 = pneg %p224
        %s412 = sand.u32 %s214, 1
        %s413 = scalar_lea.sflag [#allocation6], %s412
        %s414 = sand.u32 %s214, 1
        %s415 = smul.addr %s414, 8
        %s416 = scalar_lea.vmem [#allocation13], %s415
        %p417 = scmp.eq.s32.totalorder %s33, 0
        // Predicated region
        $region69: #{tpu_custom_call.1} parent=47 // pred_check
          %p418 = pneg %p417
        $region70: #{tpu_custom_call.1} parent=47 // pred_check_branch
          %420 = sbr.rel (%p418) target = $region72
        $region71: #{tpu_custom_call.1} parent=47 // pred_region
          %v421 = vld [vmem:[%s357] sm:$0xff]
          %v422 = vld [vmem:[#allocation12] sm:$0xff]
          %v423 = vld [vmem:[#allocation12 + $0x8] sm:$0xff]
          %v424 = vld [vmem:[#allocation12 + $0x10] sm:$0xff]
          %v425 = vld [vmem:[#allocation12 + $0x18] sm:$0xff]
          %v426 = vld [vmem:[%s6] sm:$0x1]
          %v428 = vperm.slane %v426, 0
          %vm430 = vcmask 261120
          %v432 = vsel %vm430, %v421, 0
          %434 = vmatpush.msra.mxu0 0.0
          %435 = vmatpush.msra.mxu0 0.0
          %436 = vmatpush.msra.mxu0 0.0
          %437 = vmatpush.msra.mxu0 0.0
          %438 = vmatpush.msra.mxu0 0.0
          %439 = vmatpush.msra.mxu0 0.0
          %440 = vmatpush.msra.mxu0 0.0
          %441 = vmatpush.msra.mxu0 0.0
          %442 = vmatpush.msra.mxu0 0.0
          %443 = vmatpush.msra.mxu0 0.0
          %444 = vmatpush.msra.mxu0 0.0
          %445 = vmatpush.msra.mxu0 0.0
          %446 = vmatpush.msra.mxu0 %v425
          %447 = vmatpush.msra.mxu0 %v424
          %448 = vmatpush.msra.mxu0 %v423
          %449 = vmatpush.msra.mxu0 %v422
          %450 = vmatmul.f32.gmra.mxu0 %v432
          %v451 = vpop.f32.mrf.mxu0
          %v452 = vadd.f32 %v428, %v451
          %453 = vdwg.mxu0
          %vm454 = vcmask 523264
          %455 = vst.msk [vmem:[#allocation2] sm:$0xff] %vm454, %v452
        $region72: #{tpu_custom_call.1} parent=47 // pred_fallthru
          _
        %v456 = vld [vmem:[%s347] sm:$0xff]
        %v457 = vld [vmem:[#allocation10] sm:$0xff]
        %v458 = vld [vmem:[#allocation10 + $0x8] sm:$0xff]
        %v459 = vld [vmem:[#allocation10 + $0x10] sm:$0xff]
        %v460 = vld [vmem:[#allocation10 + $0x18] sm:$0xff]
        %v461 = vld [vmem:[%s4] sm:$0x1]
        %v463 = vperm.slane %v461, 0
        %vm465 = vcmask 261120
        %v467 = vsel %vm465, %v456, 0
        %469 = vmatpush.msra.mxu0 0.0
        %470 = vmatpush.msra.mxu0 0.0
        %471 = vmatpush.msra.mxu0 0.0
        %472 = vmatpush.msra.mxu0 0.0
        %473 = vmatpush.msra.mxu0 0.0
        %474 = vmatpush.msra.mxu0 0.0
        %475 = vmatpush.msra.mxu0 0.0
        %476 = vmatpush.msra.mxu0 0.0
        %477 = vmatpush.msra.mxu0 0.0
        %478 = vmatpush.msra.mxu0 0.0
        %479 = vmatpush.msra.mxu0 0.0
        %480 = vmatpush.msra.mxu0 0.0
        %481 = vmatpush.msra.mxu0 %v460
        %482 = vmatpush.msra.mxu0 %v459
        %483 = vmatpush.msra.mxu0 %v458
        %484 = vmatpush.msra.mxu0 %v457
        %485 = vmatmul.f32.gmra.mxu0 %v467
        %v486 = vpop.f32.mrf.mxu0
        %v487 = vadd.f32 %v463, %v486
        %488 = vdwg.mxu0
        %v489 = vld [vmem:[#allocation2] sm:$0xff]
        %v490 = vld [vmem:[%s366] sm:$0x1]
        %v492 = vperm.slane %v490, 0
        %vm494 = vcmask 64512
        %v496 = vsel %vm494, %v487, 0
        %v499 = vsel %vm494, %v489, 0
        %501 = vmatpush.xpose.msra.mxu0 0.0
        %502 = vmatpush.xpose.msra.mxu0 0.0
        %503 = vmatpush.xpose.msra.mxu0 0.0
        %504 = vmatpush.xpose.msra.mxu0 0.0
        %505 = vmatpush.xpose.msra.mxu0 0.0
        %506 = vmatpush.xpose.msra.mxu0 0.0
        %507 = vmatpush.xpose.msra.mxu0 0.0
        %508 = vmatpush.xpose.msra.mxu0 0.0
        %509 = vmatpush.xpose.msra.mxu0 0.0
        %510 = vmatpush.xpose.msra.mxu0 0.0
        %511 = vmatpush.xpose.msra.mxu0 0.0
        %512 = vmatpush.xpose.msra.mxu0 0.0
        %513 = vmatpush.xpose.msra.mxu0 0.0
        %514 = vmatpush.xpose.msra.mxu0 0.0
        %515 = vmatpush.xpose.msra.mxu0 0.0
        %516 = vmatpush.xpose.msra.mxu0 %v499
        %517 = vmatmul.f32.gmra.mxu0 %v496
        %v518 = vpop.f32.mrf.mxu0
        %v519 = vadd.f32 %v492, %v518
        %520 = vdwg.mxu0
        %v521 = vsel %vm494, %v519, -inf
        %522 = vmax.xlane.f32.xlu0 %v521
        %v523 = vpop.xlane.xlu0 %522
        %v524 = vsub.f32 %v519, %v523
        %v525 = vmul.f32 %v524, 1.442695
        %v526 = vpow.pop %v525
        %v527 = vsel %vm494, %v526, 0.0
        %528 = vadd.xlane.f32.xlu0 %v527
        %v529 = vpop.xlane.xlu0 %528
        %v530 = vrcp.pop %v529
        %v531 = vmul.f32 %v526, %v530
        %532 = vrot.lane.b32.xlu0 %v489, 96
        %v533 = vpop.permute.xlu0 %532
        %v536 = vsel %vm494, %v531, 0
        %538 = vmatpush.msra.mxu0 0.0
        %539 = vmatpush.msra.mxu0 0.0
        %540 = vmatpush.msra.mxu0 0.0
        %541 = vmatpush.msra.mxu0 0.0
        %542 = vmatpush.msra.mxu0 0.0
        %543 = vmatpush.msra.mxu0 0.0
        %544 = vmatpush.msra.mxu0 0.0
        %545 = vmatpush.msra.mxu0 0.0
        %546 = vmatpush.msra.mxu0 0.0
        %547 = vmatpush.msra.mxu0 0.0
        %548 = vmatpush.msra.mxu0 0.0
        %549 = vmatpush.msra.mxu0 0.0
        %550 = vmatpush.msra.mxu0 0.0
        %551 = vmatpush.msra.mxu0 0.0
        %552 = vmatpush.msra.mxu0 0.0
        %553 = vmatpush.msra.mxu0 %v533
        %554 = vmatmul.f32.gmra.mxu0 %v536
        %v555 = vpop.f32.mrf.mxu0
        %v556 = vadd.f32 0.0, %v555
        %557 = vdwg.mxu0
        %558 = vrot.lane.b32.xlu0 %v487, 120
        %v559 = vpop.permute.xlu0 %558
        %560 = vrot.lane.b32.xlu0 %v489, 120
        %v561 = vpop.permute.xlu0 %560
        %v562 = vsel %vm494, %v559, 0
        %v564 = vsel %vm494, %v561, 0
        %566 = vmatpush.xpose.msra.mxu0 0.0
        %567 = vmatpush.xpose.msra.mxu0 0.0
        %568 = vmatpush.xpose.msra.mxu0 0.0
        %569 = vmatpush.xpose.msra.mxu0 0.0
        %570 = vmatpush.xpose.msra.mxu0 0.0
        %571 = vmatpush.xpose.msra.mxu0 0.0
        %572 = vmatpush.xpose.msra.mxu0 0.0
        %573 = vmatpush.xpose.msra.mxu0 0.0
        %574 = vmatpush.xpose.msra.mxu0 0.0
        %575 = vmatpush.xpose.msra.mxu0 0.0
        %576 = vmatpush.xpose.msra.mxu0 0.0
        %577 = vmatpush.xpose.msra.mxu0 0.0
        %578 = vmatpush.xpose.msra.mxu0 0.0
        %579 = vmatpush.xpose.msra.mxu0 0.0
        %580 = vmatpush.xpose.msra.mxu0 0.0
        %581 = vmatpush.xpose.msra.mxu0 %v564
        %582 = vmatmul.f32.gmra.mxu0 %v562
        %v583 = vpop.f32.mrf.mxu0
        %v584 = vadd.f32 %v492, %v583
        %585 = vdwg.mxu0
        %v586 = vsel %vm494, %v584, -inf
        %587 = vmax.xlane.f32.xlu0 %v586
        %v588 = vpop.xlane.xlu0 %587
        %v589 = vsub.f32 %v584, %v588
        %v590 = vmul.f32 %v589, 1.442695
        %v591 = vpow.pop %v590
        %v592 = vsel %vm494, %v591, 0.0
        %593 = vadd.xlane.f32.xlu0 %v592
        %v594 = vpop.xlane.xlu0 %593
        %v595 = vrcp.pop %v594
        %v596 = vmul.f32 %v591, %v595
        %597 = vrot.lane.b32.xlu0 %v489, 88
        %v598 = vpop.permute.xlu0 %597
        %v601 = vsel %vm494, %v596, 0
        %603 = vmatpush.msra.mxu0 0.0
        %604 = vmatpush.msra.mxu0 0.0
        %605 = vmatpush.msra.mxu0 0.0
        %606 = vmatpush.msra.mxu0 0.0
        %607 = vmatpush.msra.mxu0 0.0
        %608 = vmatpush.msra.mxu0 0.0
        %609 = vmatpush.msra.mxu0 0.0
        %610 = vmatpush.msra.mxu0 0.0
        %611 = vmatpush.msra.mxu0 0.0
        %612 = vmatpush.msra.mxu0 0.0
        %613 = vmatpush.msra.mxu0 0.0
        %614 = vmatpush.msra.mxu0 0.0
        %615 = vmatpush.msra.mxu0 0.0
        %616 = vmatpush.msra.mxu0 0.0
        %617 = vmatpush.msra.mxu0 0.0
        %618 = vmatpush.msra.mxu0 %v598
        %619 = vmatmul.f32.gmra.mxu0 %v601
        %v620 = vpop.f32.mrf.mxu0
        %v621 = vadd.f32 0.0, %v620
        %622 = vdwg.mxu0
        %624 = vrot.lane.b32.xlu0 %v621, 8
        %v625 = vpop.permute.xlu0 %624
        %v627 = vsel %vm494, %v556, %v625
        %vm628 = vcmask 130048
        %629 = vst.msk [vmem:[#allocation3] sm:$0xff] %vm628, %v627
        %630 = vrot.lane.b32.xlu0 %v487, 112
        %v631 = vpop.permute.xlu0 %630
        %632 = vrot.lane.b32.xlu0 %v489, 112
        %v633 = vpop.permute.xlu0 %632
        %v634 = vsel %vm494, %v631, 0
        %v636 = vsel %vm494, %v633, 0
        %638 = vmatpush.xpose.msra.mxu0 0.0
        %639 = vmatpush.xpose.msra.mxu0 0.0
        %640 = vmatpush.xpose.msra.mxu0 0.0
        %641 = vmatpush.xpose.msra.mxu0 0.0
        %642 = vmatpush.xpose.msra.mxu0 0.0
        %643 = vmatpush.xpose.msra.mxu0 0.0
        %644 = vmatpush.xpose.msra.mxu0 0.0
        %645 = vmatpush.xpose.msra.mxu0 0.0
        %646 = vmatpush.xpose.msra.mxu0 0.0
        %647 = vmatpush.xpose.msra.mxu0 0.0
        %648 = vmatpush.xpose.msra.mxu0 0.0
        %649 = vmatpush.xpose.msra.mxu0 0.0
        %650 = vmatpush.xpose.msra.mxu0 0.0
        %651 = vmatpush.xpose.msra.mxu0 0.0
        %652 = vmatpush.xpose.msra.mxu0 0.0
        %653 = vmatpush.xpose.msra.mxu0 %v636
        %654 = vmatmul.f32.gmra.mxu0 %v634
        %v655 = vpop.f32.mrf.mxu0
        %v656 = vadd.f32 %v492, %v655
        %657 = vdwg.mxu0
        %v658 = vsel %vm494, %v656, -inf
        %659 = vmax.xlane.f32.xlu0 %v658
        %v660 = vpop.xlane.xlu0 %659
        %v661 = vsub.f32 %v656, %v660
        %v662 = vmul.f32 %v661, 1.442695
        %v663 = vpow.pop %v662
        %v664 = vsel %vm494, %v663, 0.0
        %665 = vadd.xlane.f32.xlu0 %v664
        %v666 = vpop.xlane.xlu0 %665
        %v667 = vrcp.pop %v666
        %v668 = vmul.f32 %v663, %v667
        %669 = vrot.lane.b32.xlu0 %v489, 80
        %v670 = vpop.permute.xlu0 %669
        %v673 = vsel %vm494, %v668, 0
        %675 = vmatpush.msra.mxu0 0.0
        %676 = vmatpush.msra.mxu0 0.0
        %677 = vmatpush.msra.mxu0 0.0
        %678 = vmatpush.msra.mxu0 0.0
        %679 = vmatpush.msra.mxu0 0.0
        %680 = vmatpush.msra.mxu0 0.0
        %681 = vmatpush.msra.mxu0 0.0
        %682 = vmatpush.msra.mxu0 0.0
        %683 = vmatpush.msra.mxu0 0.0
        %684 = vmatpush.msra.mxu0 0.0
        %685 = vmatpush.msra.mxu0 0.0
        %686 = vmatpush.msra.mxu0 0.0
        %687 = vmatpush.msra.mxu0 0.0
        %688 = vmatpush.msra.mxu0 0.0
        %689 = vmatpush.msra.mxu0 0.0
        %690 = vmatpush.msra.mxu0 %v670
        %691 = vmatmul.f32.gmra.mxu0 %v673
        %v692 = vpop.f32.mrf.mxu0
        %v693 = vadd.f32 0.0, %v692
        %694 = vdwg.mxu0
        %695 = vrot.lane.b32.xlu0 %v487, 104
        %v696 = vpop.permute.xlu0 %695
        %697 = vrot.lane.b32.xlu0 %v489, 104
        %v698 = vpop.permute.xlu0 %697
        %v699 = vsel %vm494, %v696, 0
        %v701 = vsel %vm494, %v698, 0
        %703 = vmatpush.xpose.msra.mxu0 0.0
        %704 = vmatpush.xpose.msra.mxu0 0.0
        %705 = vmatpush.xpose.msra.mxu0 0.0
        %706 = vmatpush.xpose.msra.mxu0 0.0
        %707 = vmatpush.xpose.msra.mxu0 0.0
        %708 = vmatpush.xpose.msra.mxu0 0.0
        %709 = vmatpush.xpose.msra.mxu0 0.0
        %710 = vmatpush.xpose.msra.mxu0 0.0
        %711 = vmatpush.xpose.msra.mxu0 0.0
        %712 = vmatpush.xpose.msra.mxu0 0.0
        %713 = vmatpush.xpose.msra.mxu0 0.0
        %714 = vmatpush.xpose.msra.mxu0 0.0
        %715 = vmatpush.xpose.msra.mxu0 0.0
        %716 = vmatpush.xpose.msra.mxu0 0.0
        %717 = vmatpush.xpose.msra.mxu0 0.0
        %718 = vmatpush.xpose.msra.mxu0 %v701
        %719 = vmatmul.f32.gmra.mxu0 %v699
        %v720 = vpop.f32.mrf.mxu0
        %v721 = vadd.f32 %v492, %v720
        %722 = vdwg.mxu0
        %v723 = vsel %vm494, %v721, -inf
        %724 = vmax.xlane.f32.xlu0 %v723
        %v725 = vpop.xlane.xlu0 %724
        %v726 = vsub.f32 %v721, %v725
        %v727 = vmul.f32 %v726, 1.442695
        %v728 = vpow.pop %v727
        %v729 = vsel %vm494, %v728, 0.0
        %730 = vadd.xlane.f32.xlu0 %v729
        %v731 = vpop.xlane.xlu0 %730
        %v732 = vrcp.pop %v731
        %v733 = vmul.f32 %v728, %v732
        %734 = vrot.lane.b32.xlu0 %v489, 72
        %v735 = vpop.permute.xlu0 %734
        %v738 = vsel %vm494, %v733, 0
        %740 = vmatpush.msra.mxu0 0.0
        %741 = vmatpush.msra.mxu0 0.0
        %742 = vmatpush.msra.mxu0 0.0
        %743 = vmatpush.msra.mxu0 0.0
        %744 = vmatpush.msra.mxu0 0.0
        %745 = vmatpush.msra.mxu0 0.0
        %746 = vmatpush.msra.mxu0 0.0
        %747 = vmatpush.msra.mxu0 0.0
        %748 = vmatpush.msra.mxu0 0.0
        %749 = vmatpush.msra.mxu0 0.0
        %750 = vmatpush.msra.mxu0 0.0
        %751 = vmatpush.msra.mxu0 0.0
        %752 = vmatpush.msra.mxu0 0.0
        %753 = vmatpush.msra.mxu0 0.0
        %754 = vmatpush.msra.mxu0 0.0
        %755 = vmatpush.msra.mxu0 %v735
        %756 = vmatmul.f32.gmra.mxu0 %v738
        %v757 = vpop.f32.mrf.mxu0
        %v758 = vadd.f32 0.0, %v757
        %759 = vdwg.mxu0
        %761 = vrot.lane.b32.xlu0 %v758, 8
        %v762 = vpop.permute.xlu0 %761
        %v764 = vsel %vm494, %v693, %v762
        %766 = vrot.lane.b32.xlu0 %v764, 16
        %v767 = vpop.permute.xlu0 %766
        %vm769 = vcmask 261248
        %770 = vst.msk [vmem:[#allocation3] sm:$0xff] %vm769, %v767
        %v771 = vld [vmem:[#allocation3] sm:$0xff]
        %772 = vst.msk [vmem:[%s416] sm:$0xff] %vm465, %v771
        %s773 = sand.u32 %s214, 1
        %s774 = scalar_lea.sflag [#allocation6], %s773
        %s775 = sand.u32 %s214, 1
        %s776 = smul.addr %s775, 8
        %s777 = scalar_lea.vmem [#allocation13], %s776
        // Predicated region
        $region73: #{tpu_custom_call.1} parent=47 // pred_check
          %p778 = pneg %p224
        $region74: #{tpu_custom_call.1} parent=47 // pred_check_branch
          %780 = sbr.rel (%p778) target = $region76
        $region75: #{tpu_custom_call.1} parent=47 // pred_region
          %782 = vsyncadd %s774, 0
          %s783 = sadd.s32 %s33, %s32
          %s784 = smul.addr %s783, 8
          %s785 = scalar_lea.hbm %s7, %s784
          %s787 = sshll.u32 %s777, 4
          %s788 = int_to_ptr.vmem [resolvable:$true] %s787
          %s789 = sshll.u32 %s785, 4
          %s790 = int_to_ptr.hbm [resolvable:$true] %s789
          %792 = dma.vmem_to_hbm [thread:$0]  %s788, 128, %s790, %s774
        $region76: #{tpu_custom_call.1} parent=47 // pred_fallthru
          _
      $region48: #{tpu_custom_call.1} parent=5 // pred_fallthru
        _
      %p793 = scmp.le.s32.totalorder 2, %s23
      // Predicated region
      $region77: #{tpu_custom_call.1} parent=5 // pred_check
        %p794 = pneg %p793
      $region78: #{tpu_custom_call.1} parent=5 // pred_check_branch
        %796 = sbr.rel (%p794) target = $region80
      $region79: #{tpu_custom_call.1} parent=5 // pred_region
        %s797 = ssub.s32 %s23, 2
        // Predicated region
        $region81: #{tpu_custom_call.1} parent=79 // pred_check
          %p798 = pneg %p230
        $region82: #{tpu_custom_call.1} parent=79 // pred_check_branch
          %800 = sbr.rel (%p798) target = $region84
        $region83: #{tpu_custom_call.1} parent=79 // pred_region
          %s801 = sand.u32 %s215, 1
          %s802 = scalar_lea.sflag [#allocation6], %s801
          %s803 = sand.u32 %s215, 1
          %s804 = smul.addr %s803, 8
          %s805 = scalar_lea.vmem [#allocation13], %s804
          %807 = dma.done %s802, 128
        $region84: #{tpu_custom_call.1} parent=79 // pred_fallthru
          _
      $region80: #{tpu_custom_call.1} parent=5 // pred_fallthru
        _
    $region6: #{tpu_custom_call.1} parent=1 // loop_footer
      %s27 = sadd.s32 1, %s23
    $region7: #{tpu_custom_call.1} parent=1 // loop_footer_branch
      %22 = sbr.rel target = $region3
    $region8: #{tpu_custom_call.1} parent=1 // loop_exit
      _
    %808 = vsyncpa [#allocation5], 1
    %s809 = scalar_lea.sflag [#allocation5], 1
    %810 = vsyncpa %s809, 1
    %811 = vsyncpa [#allocation8], 1
    %s812 = scalar_lea.sflag [#allocation8], 1
    %813 = vsyncpa %s812, 1
    %814 = vsyncpa [#allocation11], 1
    %815 = vsyncpa [#allocation6], 1
    %s816 = scalar_lea.sflag [#allocation6], 1
    %817 = vsyncpa %s816, 1

</llo_original>
